<compile_context>
chip_gen: v5e
topology: v5e:2x2
jax: 0.10.0
libtpu: 0.0.40
codegen_flags: <defaults>
</compile_context>

<pallas_src>
import jax
import jax.numpy as jnp
from jax import lax
from jax.experimental import pallas as pl
from jax.experimental.pallas import tpu as pltpu

NUM_DOCS = 2        # len(inputs)
NUM_SENTS = 4       # sentences per doc
SEQ_LEN = 8         # tokens per sentence (padded)
EMB_DIM = 16        # params['embedding_dim']
LSTM_DIM = 32       # params['lstm_dim']
HIDDEN_DIM = 32     # params['hidden_dim']
NUM_LABELS = 3      # task == 'class'
MAX_LEN = 50        # self.max_len, hidden_layer in_features
VOCAB = 100
VOCAB_PAD = 128     # pad vocab to one full lane tile for the one-hot matmul
BN_EPS = 1e-5
COS_EPS = 1e-8

B_TOT = NUM_DOCS * NUM_SENTS          # 8 sentences total
NPAIR = B_TOT - 1                     # 7 consecutive pairs


def _pad8(n):
    return (n + 7) & ~7


# ---- params-slab row offsets (all multiples of 8 -> aligned static slices) --
R_EMB = 0                              # [128, 16]  padded embedding table
R_WIH = R_EMB + VOCAB_PAD              # [16, 128]  W_ih (g cols pre-scaled x2)
R_WHH = R_WIH + _pad8(EMB_DIM)         # [32, 128]  W_hh (g cols pre-scaled x2)
R_BIAS = R_WHH + _pad8(LSTM_DIM)       # [1, 128]   b_ih + b_hh (g cols x2)
R_SEL = R_BIAS + 8                     # [D, B-1]   doc/pair selector
R_W1 = R_SEL + _pad8(NUM_DOCS)         # [B-1, HID] hidden_layer weight (expanded)
R_B1 = R_W1 + _pad8(NPAIR)             # [1, HID]
R_W2 = R_B1 + 8                        # [HID, 3]   BN-folded predict weight
R_B2 = R_W2 + _pad8(HIDDEN_DIM)        # [1, 3]     BN-folded predict bias
P_ROWS = R_B2 + 8                      # 248
P_LANES = 128

# ---- data-slab row offsets --------------------------------------------------
R_TOK = 0                              # [T*B, 1] time-major token ids
R_LEN = SEQ_LEN * B_TOT                # [B, 1]   sentence lengths
R_ODX = R_LEN + B_TOT                  # [B, 1]   flattened unsort index
D_ROWS = R_ODX + B_TOT                 # 80


# --------------------------- fused forward kernel -----------------------------
def fused_kernel(data_ref, par_ref, out_ref):
    B, T, E, H = B_TOT, SEQ_LEN, EMB_DIM, LSTM_DIM
    D, S, L = NUM_DOCS, NUM_SENTS, NUM_LABELS

    data = data_ref[...]                                   # [80, 1] int32
    tok = data[R_TOK:R_TOK + T * B, :]                     # [64, 1]
    len_v = data[R_LEN:R_LEN + B, :]                       # [8, 1]
    odx = data[R_ODX:R_ODX + B, :]                         # [8, 1]

    # ---- in-kernel embedding lookup: one-hot(iota == token) @ table (MXU) --
    vocab_iota = lax.broadcasted_iota(jnp.int32, (T * B, VOCAB_PAD), 1)
    onehot = jnp.where(vocab_iota == tok, 1.0, 0.0).astype(jnp.bfloat16)
    embeds = par_ref[R_EMB:R_EMB + VOCAB_PAD, 0:E]         # [128, 16]
    x = jnp.dot(onehot, embeds.astype(jnp.bfloat16),
                preferred_element_type=jnp.float32)        # [64, 16]

    # ---- input projection hoisted out of the recurrence: one big MXU op ----
    w_ih = par_ref[R_WIH:R_WIH + E, :]                     # [16, 128]
    bias = par_ref[R_BIAS:R_BIAS + 1, :]                   # [1, 128]
    gx = jnp.dot(x.astype(jnp.bfloat16), w_ih.astype(jnp.bfloat16),
                 preferred_element_type=jnp.float32) + bias        # [64, 128]

    # ---- LSTM recurrence, statically unrolled (T small & fixed) -------------
    # TODO(synk): drive the MXU explicitly (pltpu.matmul_push_rhs once, then
    #             matmul_acc_lhs/pop per step) to pin W_hh in weight staging;
    #             for now we rely on Mosaic hoisting the loop-invariant RHS.
    whh_bf = par_ref[R_WHH:R_WHH + H, :].astype(jnp.bfloat16)      # [32, 128]
    h = jnp.zeros((B, H), jnp.float32)
    c = jnp.zeros((B, H), jnp.float32)
    for t in range(T):
        gates = gx[t * B:(t + 1) * B, :] + jnp.dot(
            h.astype(jnp.bfloat16), whh_bf,
            preferred_element_type=jnp.float32)                    # [8, 128]
        # One EUP pass over the full [8,128] vreg; g columns were pre-scaled
        # by 2 at trace time so tanh(g) = 2*sigmoid(2g) - 1.
        sg = jax.nn.sigmoid(gates)
        i_g = sg[:, 0 * H:1 * H]
        f_g = sg[:, 1 * H:2 * H]
        g_g = 2.0 * sg[:, 2 * H:3 * H] - 1.0
        o_g = sg[:, 3 * H:4 * H]
        c_new = f_g * c + i_g * g_g
        h_new = o_g * jnp.tanh(c_new)
        # Freeze state once t >= length: reproduces ht[-1] of the packed seq.
        m = len_v > t                                              # [8, 1]
        c = jnp.where(m, c_new, c)
        h = jnp.where(m, h_new, h)
    # TODO(synk): if T or B grows, switch to lax.fori_loop(..., unroll=True)
    #             and slice gx per step to bound live ranges.

    # ---- unsort by original_index: in-kernel one-hot permutation matmul ----
    col_iota = lax.broadcasted_iota(jnp.int32, (B, B), 1)
    perm = jnp.where(col_iota == odx, 1.0, 0.0)                    # [8, 8]
    h_u = jnp.dot(perm, h, preferred_element_type=jnp.float32)     # [8, 32]

    # ---- cosine similarity of consecutive rows ------------------------------
    a = h_u[0:B - 1, :]
    b = h_u[1:B, :]
    dot_ab = jnp.sum(a * b, axis=-1, keepdims=True)
    na = jnp.sqrt(jnp.sum(a * a, axis=-1, keepdims=True))
    nb = jnp.sqrt(jnp.sum(b * b, axis=-1, keepdims=True))
    cos_all = dot_ab / jnp.maximum(na * nb, COS_EPS)               # [7, 1]

    # ---- per-doc average + head (hidden/ReLU/BN-folded predict/softmax) ----
    sel = par_ref[R_SEL:R_SEL + D, 0:B - 1]                        # [2, 7]
    w1big = par_ref[R_W1:R_W1 + (B - 1), 0:HIDDEN_DIM]             # [7, 32]
    b1 = par_ref[R_B1:R_B1 + 1, 0:HIDDEN_DIM]                      # [1, 32]
    w2f = par_ref[R_W2:R_W2 + HIDDEN_DIM, 0:L]                     # [32, 3]
    b2f = par_ref[R_B2:R_B2 + 1, 0:L]                              # [1, 3]

    avg = jnp.dot(sel, cos_all,
                  preferred_element_type=jnp.float32) * (1.0 / (S - 1))  # [2,1]
    # hidden_layer applied directly to the non-zero deg columns (zero-padded
    # columns of the 50-wide deg vector contribute nothing).
    z = jnp.dot(sel, cos_all * w1big,
                preferred_element_type=jnp.float32) + b1            # [2, 32]
    z = jnp.maximum(z, 0.0)                                         # ReLU
    logits = jnp.dot(z, w2f, preferred_element_type=jnp.float32) + b2f   # [2, 3]
    # F.softmax(coherence_pred, dim=0) -> softmax over the doc axis
    m0 = jnp.max(logits, axis=0, keepdims=True)
    e = jnp.exp(logits - m0)
    pred = e / jnp.sum(e, axis=0, keepdims=True)

    # ---- single lane-padded output tile: cols [0:3)=pred, col 3=avg --------
    out_ref[...] = jnp.zeros((8, P_LANES), jnp.float32)
    out_ref[0:D, 0:L] = pred
    out_ref[0:D, L:L + 1] = avg


def fused_forward_call(data_i32, params_slab):
    return pl.pallas_call(
        fused_kernel,
        out_shape=jax.ShapeDtypeStruct((8, P_LANES), jnp.float32),
        grid=(1,),
        in_specs=[pl.BlockSpec(data_i32.shape, lambda i: (0, 0)),
                  pl.BlockSpec(params_slab.shape, lambda i: (0, 0))],
        out_specs=pl.BlockSpec((8, P_LANES), lambda i: (0, 0)),
        compiler_params=pltpu.CompilerParams(
            dimension_semantics=("arbitrary",)),
    )(data_i32, params_slab)


# ------------------------- one-time params-slab builder -----------------------
def build_params_slab(embeds, w_ih, w_hh, bias, w1, b1, w2, b2,
                      bn_gamma, bn_beta, bn_mean, bn_var):
    # pre-scale g-gate columns by 2 so one in-kernel sigmoid covers all gates
    gscale = jnp.ones((4 * LSTM_DIM,), jnp.float32)
    gscale = gscale.at[2 * LSTM_DIM:3 * LSTM_DIM].set(2.0)
    w_ih_s = w_ih * gscale[None, :]
    w_hh_s = w_hh * gscale[None, :]
    bias_s = bias * gscale[None, :]

    # selector over consecutive-pair index r: 1 iff pair (r, r+1) stays in doc d
    r = jnp.arange(B_TOT - 1)
    valid = (r % NUM_SENTS) != (NUM_SENTS - 1)
    sel = (((r[None, :] // NUM_SENTS) == jnp.arange(NUM_DOCS)[:, None]) &
           valid[None, :]).astype(jnp.float32)                      # [D, B-1]
    # hidden_layer weight rearranged so z = sel @ (cos_all * w1big)
    w1big = w1[r % NUM_SENTS, :] * valid.astype(jnp.float32)[:, None]   # [B-1, HID]

    # fold eval-mode BatchNorm1d (affine, post-ReLU) into the predict layer
    bn_scale = bn_gamma / jnp.sqrt(bn_var + BN_EPS)
    bn_shift = bn_beta - bn_scale * bn_mean
    w2f = w2 * bn_scale[:, None]
    b2f = b2 + bn_shift[None, :] @ w2

    emb_pad = jnp.zeros((VOCAB_PAD, EMB_DIM), jnp.float32).at[:VOCAB, :].set(embeds)

    slab = jnp.zeros((P_ROWS, P_LANES), jnp.float32)

    def put(s, arr, r0):
        return s.at[r0:r0 + arr.shape[0], 0:arr.shape[1]].set(arr)

    slab = put(slab, emb_pad, R_EMB)
    slab = put(slab, w_ih_s, R_WIH)
    slab = put(slab, w_hh_s, R_WHH)
    slab = put(slab, bias_s, R_BIAS)
    slab = put(slab, sel, R_SEL)
    slab = put(slab, w1big, R_W1)
    slab = put(slab, b1, R_B1)
    slab = put(slab, w2f, R_W2)
    slab = put(slab, b2f, R_B2)
    return slab


# ---------------------------------- forward -----------------------------------
def forward(tokens, lengths, original_index, params_slab):
    D, S, T = tokens.shape
    B = D * S
    # time-major token column: row t*B + b is timestep t of sentence b (b=d*S+s)
    tok_col = jnp.transpose(tokens.reshape(B, T).astype(jnp.int32),
                            (1, 0)).reshape(T * B, 1)
    len_col = lengths.reshape(B, 1).astype(jnp.int32)
    # flattened unsort index implementing torch.gather(final_output, 0, odx)
    odx_col = (original_index.astype(jnp.int32) +
               jnp.arange(D, dtype=jnp.int32)[:, None] * S).reshape(B, 1)
    data_i32 = jnp.concatenate([tok_col, len_col, odx_col], axis=0)

    out = fused_forward_call(data_i32, params_slab)
    coherence_pred = out[:D, :NUM_LABELS]
    global_avg_deg = out[:D, NUM_LABELS]
    return coherence_pred, global_avg_deg


if __name__ == "__main__":
    key = jax.random.PRNGKey(0)
    ks = jax.random.split(key, 10)

    # ------------------ deterministic parameter init ------------------
    embeds = jax.random.normal(ks[0], (VOCAB, EMB_DIM), jnp.float32)
    lstm_scale = 1.0 / jnp.sqrt(LSTM_DIM)
    w_ih = jax.random.uniform(ks[1], (EMB_DIM, 4 * LSTM_DIM), jnp.float32,
                              -lstm_scale, lstm_scale)
    w_hh = jax.random.uniform(ks[2], (LSTM_DIM, 4 * LSTM_DIM), jnp.float32,
                              -lstm_scale, lstm_scale)
    b_ih = jax.random.uniform(ks[3], (4 * LSTM_DIM,), jnp.float32,
                              -lstm_scale, lstm_scale)
    b_hh = jax.random.uniform(ks[4], (4 * LSTM_DIM,), jnp.float32,
                              -lstm_scale, lstm_scale)
    bias = (b_ih + b_hh).reshape(1, 4 * LSTM_DIM)

    def xavier(k, fan_in, fan_out):
        lim = jnp.sqrt(6.0 / (fan_in + fan_out))
        return jax.random.uniform(k, (fan_in, fan_out), jnp.float32, -lim, lim)

    w1 = xavier(ks[5], MAX_LEN, HIDDEN_DIM)        # hidden_layer weight (in, out)
    b1 = jnp.zeros((1, HIDDEN_DIM), jnp.float32)   # biases zeroed in __init__
    w2 = xavier(ks[6], HIDDEN_DIM, NUM_LABELS)     # predict_layer weight (in, out)
    b2 = jnp.zeros((1, NUM_LABELS), jnp.float32)

    # BatchNorm1d params / running stats (fresh module, eval mode)
    bn_gamma = jnp.ones((HIDDEN_DIM,), jnp.float32)
    bn_beta = jnp.zeros((HIDDEN_DIM,), jnp.float32)
    bn_mean = jnp.zeros((HIDDEN_DIM,), jnp.float32)
    bn_var = jnp.ones((HIDDEN_DIM,), jnp.float32)

    # params slab is built once (weights-only); per-call cost is the data slab
    params_slab = jax.block_until_ready(
        build_params_slab(embeds, w_ih, w_hh, bias, w1, b1, w2, b2,
                          bn_gamma, bn_beta, bn_mean, bn_var))

    # ------------------ deterministic example inputs ------------------
    tokens = jax.random.randint(ks[7], (NUM_DOCS, NUM_SENTS, SEQ_LEN), 0, VOCAB)
    # per-doc lengths, sorted descending (pack_padded_sequence convention)
    lengths = jnp.sort(
        jax.random.randint(ks[8], (NUM_DOCS, NUM_SENTS), 3, SEQ_LEN + 1),
        axis=1)[:, ::-1]
    # per-doc permutation restoring the original sentence order
    original_index = jnp.stack([
        jax.random.permutation(jax.random.fold_in(ks[9], d), NUM_SENTS)
        for d in range(NUM_DOCS)]).astype(jnp.int32)

    forward_fn = jax.jit(forward)
    coherence_pred, global_avg_deg = forward_fn(
        tokens, lengths, original_index, params_slab)
    jax.block_until_ready((coherence_pred, global_avg_deg))
    assert coherence_pred.shape == (NUM_DOCS, NUM_LABELS)
    assert global_avg_deg.shape == (NUM_DOCS,)
    print("KERNEL_OK")
</pallas_src>

<mosaic_0001>
module attributes {stable_mosaic.version = 11 : i64} {
  func.func @fused_kernel(%arg0: i32, %arg1: memref<80x1xi32, #tpu.memory_space<vmem>>, %arg2: memref<248x128xf32, #tpu.memory_space<vmem>>, %arg3: memref<8x128xf32, #tpu.memory_space<vmem>>) attributes {dimension_semantics = [#tpu.dimension_semantics<arbitrary>], iteration_bounds = array<i64: 1>, scalar_prefetch = 0 : i64, scratch_operands = 0 : i64, tpu.core_type = #tpu.core_type<tc>, window_params = [{pipeline_mode = #tpu.pipeline_mode<synchronous>, transform_indices = @transform_0, window_bounds = array<i64: 80, 1>}, {pipeline_mode = #tpu.pipeline_mode<synchronous>, transform_indices = @transform_1, window_bounds = array<i64: 248, 128>}, {pipeline_mode = #tpu.pipeline_mode<synchronous>, transform_indices = @transform_2, window_bounds = array<i64: 8, 128>}]} {
    %c0 = arith.constant 0 : index
    %c0_0 = arith.constant 0 : index
    %0 = vector.load %arg1[%c0, %c0_0] : memref<80x1xi32, #tpu.memory_space<vmem>>, vector<80x1xi32>
    %1 = vector.extract_strided_slice %0 {offsets = [0, 0], sizes = [64, 1], strides = [1, 1]} : vector<80x1xi32> to vector<64x1xi32>
    %2 = vector.extract_strided_slice %0 {offsets = [64, 0], sizes = [8, 1], strides = [1, 1]} : vector<80x1xi32> to vector<8x1xi32>
    %3 = vector.extract_strided_slice %0 {offsets = [72, 0], sizes = [8, 1], strides = [1, 1]} : vector<80x1xi32> to vector<8x1xi32>
    %4 = tpu.iota {dimensions = array<i32: 1>} : vector<64x128xi32>
    %5 = vector.broadcast %1 : vector<64x1xi32> to vector<64x128xi32>
    %6 = arith.cmpi eq, %4, %5 : vector<64x128xi32>
    %cst = arith.constant 1.000000e+00 : f32
    %cst_1 = arith.constant 0.000000e+00 : f32
    %7 = vector.broadcast %cst : f32 to vector<64x128xf32>
    %8 = vector.broadcast %cst_1 : f32 to vector<64x128xf32>
    %9 = arith.select %6, %7, %8 : vector<64x128xi1>, vector<64x128xf32>
    %10 = arith.truncf %9 : vector<64x128xf32> to vector<64x128xbf16>
    %c0_2 = arith.constant 0 : index
    %c0_3 = arith.constant 0 : index
    %11 = vector.load %arg2[%c0_2, %c0_3] : memref<248x128xf32, #tpu.memory_space<vmem>>, vector<128x16xf32>
    %12 = arith.truncf %11 : vector<128x16xf32> to vector<128x16xbf16>
    %cst_4 = arith.constant dense<0.000000e+00> : vector<64x16xf32>
    %13 = tpu.matmul %10, %12, %cst_4 {dimension_numbers = #tpu.dot_dimension_numbers<[1], [0], [0], [1], [0, 0, 1, 1], [], []>} : vector<64x128xbf16>, vector<128x16xbf16>, vector<64x16xf32> -> vector<64x16xf32>
    %c128 = arith.constant 128 : index
    %c0_5 = arith.constant 0 : index
    %14 = vector.load %arg2[%c128, %c0_5] : memref<248x128xf32, #tpu.memory_space<vmem>>, vector<16x128xf32>
    %c176 = arith.constant 176 : index
    %c0_6 = arith.constant 0 : index
    %15 = vector.load %arg2[%c176, %c0_6] : memref<248x128xf32, #tpu.memory_space<vmem>>, vector<1x128xf32>
    %16 = arith.truncf %13 : vector<64x16xf32> to vector<64x16xbf16>
    %17 = arith.truncf %14 : vector<16x128xf32> to vector<16x128xbf16>
    %cst_7 = arith.constant dense<0.000000e+00> : vector<64x128xf32>
    %18 = tpu.matmul %16, %17, %cst_7 {dimension_numbers = #tpu.dot_dimension_numbers<[1], [0], [0], [1], [0, 0, 1, 1], [], []>} : vector<64x16xbf16>, vector<16x128xbf16>, vector<64x128xf32> -> vector<64x128xf32>
    %19 = vector.broadcast %15 : vector<1x128xf32> to vector<64x128xf32>
    %20 = arith.addf %18, %19 : vector<64x128xf32>
    %c144 = arith.constant 144 : index
    %c0_8 = arith.constant 0 : index
    %21 = vector.load %arg2[%c144, %c0_8] : memref<248x128xf32, #tpu.memory_space<vmem>>, vector<32x128xf32>
    %22 = arith.truncf %21 : vector<32x128xf32> to vector<32x128xbf16>
    %cst_9 = arith.constant 0.000000e+00 : f32
    %23 = vector.broadcast %cst_9 : f32 to vector<8x32xf32>
    %cst_10 = arith.constant 0.000000e+00 : f32
    %24 = vector.broadcast %cst_10 : f32 to vector<8x32xf32>
    %25 = vector.extract_strided_slice %20 {offsets = [0, 0], sizes = [8, 128], strides = [1, 1]} : vector<64x128xf32> to vector<8x128xf32>
    %26 = arith.truncf %23 : vector<8x32xf32> to vector<8x32xbf16>
    %cst_11 = arith.constant dense<0.000000e+00> : vector<8x128xf32>
    %27 = tpu.matmul %26, %22, %cst_11 {dimension_numbers = #tpu.dot_dimension_numbers<[1], [0], [0], [1], [0, 0, 1, 1], [], []>} : vector<8x32xbf16>, vector<32x128xbf16>, vector<8x128xf32> -> vector<8x128xf32>
    %28 = arith.addf %25, %27 : vector<8x128xf32>
    %29 = arith.negf %28 : vector<8x128xf32>
    %30 = math.exp %29 : vector<8x128xf32>
    %cst_12 = arith.constant 1.000000e+00 : f32
    %31 = vector.broadcast %cst_12 : f32 to vector<8x128xf32>
    %32 = arith.addf %31, %30 : vector<8x128xf32>
    %33 = arith.divf %31, %32 : vector<8x128xf32>
    %34 = vector.extract_strided_slice %33 {offsets = [0, 0], sizes = [8, 32], strides = [1, 1]} : vector<8x128xf32> to vector<8x32xf32>
    %35 = vector.extract_strided_slice %33 {offsets = [0, 32], sizes = [8, 32], strides = [1, 1]} : vector<8x128xf32> to vector<8x32xf32>
    %36 = vector.extract_strided_slice %33 {offsets = [0, 64], sizes = [8, 32], strides = [1, 1]} : vector<8x128xf32> to vector<8x32xf32>
    %cst_13 = arith.constant 2.000000e+00 : f32
    %37 = vector.broadcast %cst_13 : f32 to vector<8x32xf32>
    %38 = arith.mulf %37, %36 : vector<8x32xf32>
    %cst_14 = arith.constant 1.000000e+00 : f32
    %39 = vector.broadcast %cst_14 : f32 to vector<8x32xf32>
    %40 = arith.subf %38, %39 : vector<8x32xf32>
    %41 = vector.extract_strided_slice %33 {offsets = [0, 96], sizes = [8, 32], strides = [1, 1]} : vector<8x128xf32> to vector<8x32xf32>
    %42 = arith.mulf %35, %24 : vector<8x32xf32>
    %43 = arith.mulf %34, %40 : vector<8x32xf32>
    %44 = arith.addf %42, %43 : vector<8x32xf32>
    %45 = math.tanh %44 : vector<8x32xf32>
    %46 = arith.mulf %41, %45 : vector<8x32xf32>
    %c0_i32 = arith.constant 0 : i32
    %47 = vector.broadcast %c0_i32 : i32 to vector<8x1xi32>
    %48 = arith.cmpi sgt, %2, %47 : vector<8x1xi32>
    %49 = vector.shape_cast %48 : vector<8x1xi1> to vector<8x1xi1>
    %50 = vector.broadcast %49 : vector<8x1xi1> to vector<8x32xi1>
    %51 = arith.select %50, %44, %24 : vector<8x32xi1>, vector<8x32xf32>
    %52 = vector.shape_cast %48 : vector<8x1xi1> to vector<8x1xi1>
    %53 = vector.broadcast %52 : vector<8x1xi1> to vector<8x32xi1>
    %54 = arith.select %53, %46, %23 : vector<8x32xi1>, vector<8x32xf32>
    %55 = vector.extract_strided_slice %20 {offsets = [8, 0], sizes = [8, 128], strides = [1, 1]} : vector<64x128xf32> to vector<8x128xf32>
    %56 = arith.truncf %54 : vector<8x32xf32> to vector<8x32xbf16>
    %cst_15 = arith.constant dense<0.000000e+00> : vector<8x128xf32>
    %57 = tpu.matmul %56, %22, %cst_15 {dimension_numbers = #tpu.dot_dimension_numbers<[1], [0], [0], [1], [0, 0, 1, 1], [], []>} : vector<8x32xbf16>, vector<32x128xbf16>, vector<8x128xf32> -> vector<8x128xf32>
    %58 = arith.addf %55, %57 : vector<8x128xf32>
    %59 = arith.negf %58 : vector<8x128xf32>
    %60 = math.exp %59 : vector<8x128xf32>
    %cst_16 = arith.constant 1.000000e+00 : f32
    %61 = vector.broadcast %cst_16 : f32 to vector<8x128xf32>
    %62 = arith.addf %61, %60 : vector<8x128xf32>
    %63 = arith.divf %61, %62 : vector<8x128xf32>
    %64 = vector.extract_strided_slice %63 {offsets = [0, 0], sizes = [8, 32], strides = [1, 1]} : vector<8x128xf32> to vector<8x32xf32>
    %65 = vector.extract_strided_slice %63 {offsets = [0, 32], sizes = [8, 32], strides = [1, 1]} : vector<8x128xf32> to vector<8x32xf32>
    %66 = vector.extract_strided_slice %63 {offsets = [0, 64], sizes = [8, 32], strides = [1, 1]} : vector<8x128xf32> to vector<8x32xf32>
    %cst_17 = arith.constant 2.000000e+00 : f32
    %67 = vector.broadcast %cst_17 : f32 to vector<8x32xf32>
    %68 = arith.mulf %67, %66 : vector<8x32xf32>
    %cst_18 = arith.constant 1.000000e+00 : f32
    %69 = vector.broadcast %cst_18 : f32 to vector<8x32xf32>
    %70 = arith.subf %68, %69 : vector<8x32xf32>
    %71 = vector.extract_strided_slice %63 {offsets = [0, 96], sizes = [8, 32], strides = [1, 1]} : vector<8x128xf32> to vector<8x32xf32>
    %72 = arith.mulf %65, %51 : vector<8x32xf32>
    %73 = arith.mulf %64, %70 : vector<8x32xf32>
    %74 = arith.addf %72, %73 : vector<8x32xf32>
    %75 = math.tanh %74 : vector<8x32xf32>
    %76 = arith.mulf %71, %75 : vector<8x32xf32>
    %c1_i32 = arith.constant 1 : i32
    %77 = vector.broadcast %c1_i32 : i32 to vector<8x1xi32>
    %78 = arith.cmpi sgt, %2, %77 : vector<8x1xi32>
    %79 = vector.shape_cast %78 : vector<8x1xi1> to vector<8x1xi1>
    %80 = vector.broadcast %79 : vector<8x1xi1> to vector<8x32xi1>
    %81 = arith.select %80, %74, %51 : vector<8x32xi1>, vector<8x32xf32>
    %82 = vector.shape_cast %78 : vector<8x1xi1> to vector<8x1xi1>
    %83 = vector.broadcast %82 : vector<8x1xi1> to vector<8x32xi1>
    %84 = arith.select %83, %76, %54 : vector<8x32xi1>, vector<8x32xf32>
    %85 = vector.extract_strided_slice %20 {offsets = [16, 0], sizes = [8, 128], strides = [1, 1]} : vector<64x128xf32> to vector<8x128xf32>
    %86 = arith.truncf %84 : vector<8x32xf32> to vector<8x32xbf16>
    %cst_19 = arith.constant dense<0.000000e+00> : vector<8x128xf32>
    %87 = tpu.matmul %86, %22, %cst_19 {dimension_numbers = #tpu.dot_dimension_numbers<[1], [0], [0], [1], [0, 0, 1, 1], [], []>} : vector<8x32xbf16>, vector<32x128xbf16>, vector<8x128xf32> -> vector<8x128xf32>
    %88 = arith.addf %85, %87 : vector<8x128xf32>
    %89 = arith.negf %88 : vector<8x128xf32>
    %90 = math.exp %89 : vector<8x128xf32>
    %cst_20 = arith.constant 1.000000e+00 : f32
    %91 = vector.broadcast %cst_20 : f32 to vector<8x128xf32>
    %92 = arith.addf %91, %90 : vector<8x128xf32>
    %93 = arith.divf %91, %92 : vector<8x128xf32>
    %94 = vector.extract_strided_slice %93 {offsets = [0, 0], sizes = [8, 32], strides = [1, 1]} : vector<8x128xf32> to vector<8x32xf32>
    %95 = vector.extract_strided_slice %93 {offsets = [0, 32], sizes = [8, 32], strides = [1, 1]} : vector<8x128xf32> to vector<8x32xf32>
    %96 = vector.extract_strided_slice %93 {offsets = [0, 64], sizes = [8, 32], strides = [1, 1]} : vector<8x128xf32> to vector<8x32xf32>
    %cst_21 = arith.constant 2.000000e+00 : f32
    %97 = vector.broadcast %cst_21 : f32 to vector<8x32xf32>
    %98 = arith.mulf %97, %96 : vector<8x32xf32>
    %cst_22 = arith.constant 1.000000e+00 : f32
    %99 = vector.broadcast %cst_22 : f32 to vector<8x32xf32>
    %100 = arith.subf %98, %99 : vector<8x32xf32>
    %101 = vector.extract_strided_slice %93 {offsets = [0, 96], sizes = [8, 32], strides = [1, 1]} : vector<8x128xf32> to vector<8x32xf32>
    %102 = arith.mulf %95, %81 : vector<8x32xf32>
    %103 = arith.mulf %94, %100 : vector<8x32xf32>
    %104 = arith.addf %102, %103 : vector<8x32xf32>
    %105 = math.tanh %104 : vector<8x32xf32>
    %106 = arith.mulf %101, %105 : vector<8x32xf32>
    %c2_i32 = arith.constant 2 : i32
    %107 = vector.broadcast %c2_i32 : i32 to vector<8x1xi32>
    %108 = arith.cmpi sgt, %2, %107 : vector<8x1xi32>
    %109 = vector.shape_cast %108 : vector<8x1xi1> to vector<8x1xi1>
    %110 = vector.broadcast %109 : vector<8x1xi1> to vector<8x32xi1>
    %111 = arith.select %110, %104, %81 : vector<8x32xi1>, vector<8x32xf32>
    %112 = vector.shape_cast %108 : vector<8x1xi1> to vector<8x1xi1>
    %113 = vector.broadcast %112 : vector<8x1xi1> to vector<8x32xi1>
    %114 = arith.select %113, %106, %84 : vector<8x32xi1>, vector<8x32xf32>
    %115 = vector.extract_strided_slice %20 {offsets = [24, 0], sizes = [8, 128], strides = [1, 1]} : vector<64x128xf32> to vector<8x128xf32>
    %116 = arith.truncf %114 : vector<8x32xf32> to vector<8x32xbf16>
    %cst_23 = arith.constant dense<0.000000e+00> : vector<8x128xf32>
    %117 = tpu.matmul %116, %22, %cst_23 {dimension_numbers = #tpu.dot_dimension_numbers<[1], [0], [0], [1], [0, 0, 1, 1], [], []>} : vector<8x32xbf16>, vector<32x128xbf16>, vector<8x128xf32> -> vector<8x128xf32>
    %118 = arith.addf %115, %117 : vector<8x128xf32>
    %119 = arith.negf %118 : vector<8x128xf32>
    %120 = math.exp %119 : vector<8x128xf32>
    %cst_24 = arith.constant 1.000000e+00 : f32
    %121 = vector.broadcast %cst_24 : f32 to vector<8x128xf32>
    %122 = arith.addf %121, %120 : vector<8x128xf32>
    %123 = arith.divf %121, %122 : vector<8x128xf32>
    %124 = vector.extract_strided_slice %123 {offsets = [0, 0], sizes = [8, 32], strides = [1, 1]} : vector<8x128xf32> to vector<8x32xf32>
    %125 = vector.extract_strided_slice %123 {offsets = [0, 32], sizes = [8, 32], strides = [1, 1]} : vector<8x128xf32> to vector<8x32xf32>
    %126 = vector.extract_strided_slice %123 {offsets = [0, 64], sizes = [8, 32], strides = [1, 1]} : vector<8x128xf32> to vector<8x32xf32>
    %cst_25 = arith.constant 2.000000e+00 : f32
    %127 = vector.broadcast %cst_25 : f32 to vector<8x32xf32>
    %128 = arith.mulf %127, %126 : vector<8x32xf32>
    %cst_26 = arith.constant 1.000000e+00 : f32
    %129 = vector.broadcast %cst_26 : f32 to vector<8x32xf32>
    %130 = arith.subf %128, %129 : vector<8x32xf32>
    %131 = vector.extract_strided_slice %123 {offsets = [0, 96], sizes = [8, 32], strides = [1, 1]} : vector<8x128xf32> to vector<8x32xf32>
    %132 = arith.mulf %125, %111 : vector<8x32xf32>
    %133 = arith.mulf %124, %130 : vector<8x32xf32>
    %134 = arith.addf %132, %133 : vector<8x32xf32>
    %135 = math.tanh %134 : vector<8x32xf32>
    %136 = arith.mulf %131, %135 : vector<8x32xf32>
    %c3_i32 = arith.constant 3 : i32
    %137 = vector.broadcast %c3_i32 : i32 to vector<8x1xi32>
    %138 = arith.cmpi sgt, %2, %137 : vector<8x1xi32>
    %139 = vector.shape_cast %138 : vector<8x1xi1> to vector<8x1xi1>
    %140 = vector.broadcast %139 : vector<8x1xi1> to vector<8x32xi1>
    %141 = arith.select %140, %134, %111 : vector<8x32xi1>, vector<8x32xf32>
    %142 = vector.shape_cast %138 : vector<8x1xi1> to vector<8x1xi1>
    %143 = vector.broadcast %142 : vector<8x1xi1> to vector<8x32xi1>
    %144 = arith.select %143, %136, %114 : vector<8x32xi1>, vector<8x32xf32>
    %145 = vector.extract_strided_slice %20 {offsets = [32, 0], sizes = [8, 128], strides = [1, 1]} : vector<64x128xf32> to vector<8x128xf32>
    %146 = arith.truncf %144 : vector<8x32xf32> to vector<8x32xbf16>
    %cst_27 = arith.constant dense<0.000000e+00> : vector<8x128xf32>
    %147 = tpu.matmul %146, %22, %cst_27 {dimension_numbers = #tpu.dot_dimension_numbers<[1], [0], [0], [1], [0, 0, 1, 1], [], []>} : vector<8x32xbf16>, vector<32x128xbf16>, vector<8x128xf32> -> vector<8x128xf32>
    %148 = arith.addf %145, %147 : vector<8x128xf32>
    %149 = arith.negf %148 : vector<8x128xf32>
    %150 = math.exp %149 : vector<8x128xf32>
    %cst_28 = arith.constant 1.000000e+00 : f32
    %151 = vector.broadcast %cst_28 : f32 to vector<8x128xf32>
    %152 = arith.addf %151, %150 : vector<8x128xf32>
    %153 = arith.divf %151, %152 : vector<8x128xf32>
    %154 = vector.extract_strided_slice %153 {offsets = [0, 0], sizes = [8, 32], strides = [1, 1]} : vector<8x128xf32> to vector<8x32xf32>
    %155 = vector.extract_strided_slice %153 {offsets = [0, 32], sizes = [8, 32], strides = [1, 1]} : vector<8x128xf32> to vector<8x32xf32>
    %156 = vector.extract_strided_slice %153 {offsets = [0, 64], sizes = [8, 32], strides = [1, 1]} : vector<8x128xf32> to vector<8x32xf32>
    %cst_29 = arith.constant 2.000000e+00 : f32
    %157 = vector.broadcast %cst_29 : f32 to vector<8x32xf32>
    %158 = arith.mulf %157, %156 : vector<8x32xf32>
    %cst_30 = arith.constant 1.000000e+00 : f32
    %159 = vector.broadcast %cst_30 : f32 to vector<8x32xf32>
    %160 = arith.subf %158, %159 : vector<8x32xf32>
    %161 = vector.extract_strided_slice %153 {offsets = [0, 96], sizes = [8, 32], strides = [1, 1]} : vector<8x128xf32> to vector<8x32xf32>
    %162 = arith.mulf %155, %141 : vector<8x32xf32>
    %163 = arith.mulf %154, %160 : vector<8x32xf32>
    %164 = arith.addf %162, %163 : vector<8x32xf32>
    %165 = math.tanh %164 : vector<8x32xf32>
    %166 = arith.mulf %161, %165 : vector<8x32xf32>
    %c4_i32 = arith.constant 4 : i32
    %167 = vector.broadcast %c4_i32 : i32 to vector<8x1xi32>
    %168 = arith.cmpi sgt, %2, %167 : vector<8x1xi32>
    %169 = vector.shape_cast %168 : vector<8x1xi1> to vector<8x1xi1>
    %170 = vector.broadcast %169 : vector<8x1xi1> to vector<8x32xi1>
    %171 = arith.select %170, %164, %141 : vector<8x32xi1>, vector<8x32xf32>
    %172 = vector.shape_cast %168 : vector<8x1xi1> to vector<8x1xi1>
    %173 = vector.broadcast %172 : vector<8x1xi1> to vector<8x32xi1>
    %174 = arith.select %173, %166, %144 : vector<8x32xi1>, vector<8x32xf32>
    %175 = vector.extract_strided_slice %20 {offsets = [40, 0], sizes = [8, 128], strides = [1, 1]} : vector<64x128xf32> to vector<8x128xf32>
    %176 = arith.truncf %174 : vector<8x32xf32> to vector<8x32xbf16>
    %cst_31 = arith.constant dense<0.000000e+00> : vector<8x128xf32>
    %177 = tpu.matmul %176, %22, %cst_31 {dimension_numbers = #tpu.dot_dimension_numbers<[1], [0], [0], [1], [0, 0, 1, 1], [], []>} : vector<8x32xbf16>, vector<32x128xbf16>, vector<8x128xf32> -> vector<8x128xf32>
    %178 = arith.addf %175, %177 : vector<8x128xf32>
    %179 = arith.negf %178 : vector<8x128xf32>
    %180 = math.exp %179 : vector<8x128xf32>
    %cst_32 = arith.constant 1.000000e+00 : f32
    %181 = vector.broadcast %cst_32 : f32 to vector<8x128xf32>
    %182 = arith.addf %181, %180 : vector<8x128xf32>
    %183 = arith.divf %181, %182 : vector<8x128xf32>
    %184 = vector.extract_strided_slice %183 {offsets = [0, 0], sizes = [8, 32], strides = [1, 1]} : vector<8x128xf32> to vector<8x32xf32>
    %185 = vector.extract_strided_slice %183 {offsets = [0, 32], sizes = [8, 32], strides = [1, 1]} : vector<8x128xf32> to vector<8x32xf32>
    %186 = vector.extract_strided_slice %183 {offsets = [0, 64], sizes = [8, 32], strides = [1, 1]} : vector<8x128xf32> to vector<8x32xf32>
    %cst_33 = arith.constant 2.000000e+00 : f32
    %187 = vector.broadcast %cst_33 : f32 to vector<8x32xf32>
    %188 = arith.mulf %187, %186 : vector<8x32xf32>
    %cst_34 = arith.constant 1.000000e+00 : f32
    %189 = vector.broadcast %cst_34 : f32 to vector<8x32xf32>
    %190 = arith.subf %188, %189 : vector<8x32xf32>
    %191 = vector.extract_strided_slice %183 {offsets = [0, 96], sizes = [8, 32], strides = [1, 1]} : vector<8x128xf32> to vector<8x32xf32>
    %192 = arith.mulf %185, %171 : vector<8x32xf32>
    %193 = arith.mulf %184, %190 : vector<8x32xf32>
    %194 = arith.addf %192, %193 : vector<8x32xf32>
    %195 = math.tanh %194 : vector<8x32xf32>
    %196 = arith.mulf %191, %195 : vector<8x32xf32>
    %c5_i32 = arith.constant 5 : i32
    %197 = vector.broadcast %c5_i32 : i32 to vector<8x1xi32>
    %198 = arith.cmpi sgt, %2, %197 : vector<8x1xi32>
    %199 = vector.shape_cast %198 : vector<8x1xi1> to vector<8x1xi1>
    %200 = vector.broadcast %199 : vector<8x1xi1> to vector<8x32xi1>
    %201 = arith.select %200, %194, %171 : vector<8x32xi1>, vector<8x32xf32>
    %202 = vector.shape_cast %198 : vector<8x1xi1> to vector<8x1xi1>
    %203 = vector.broadcast %202 : vector<8x1xi1> to vector<8x32xi1>
    %204 = arith.select %203, %196, %174 : vector<8x32xi1>, vector<8x32xf32>
    %205 = vector.extract_strided_slice %20 {offsets = [48, 0], sizes = [8, 128], strides = [1, 1]} : vector<64x128xf32> to vector<8x128xf32>
    %206 = arith.truncf %204 : vector<8x32xf32> to vector<8x32xbf16>
    %cst_35 = arith.constant dense<0.000000e+00> : vector<8x128xf32>
    %207 = tpu.matmul %206, %22, %cst_35 {dimension_numbers = #tpu.dot_dimension_numbers<[1], [0], [0], [1], [0, 0, 1, 1], [], []>} : vector<8x32xbf16>, vector<32x128xbf16>, vector<8x128xf32> -> vector<8x128xf32>
    %208 = arith.addf %205, %207 : vector<8x128xf32>
    %209 = arith.negf %208 : vector<8x128xf32>
    %210 = math.exp %209 : vector<8x128xf32>
    %cst_36 = arith.constant 1.000000e+00 : f32
    %211 = vector.broadcast %cst_36 : f32 to vector<8x128xf32>
    %212 = arith.addf %211, %210 : vector<8x128xf32>
    %213 = arith.divf %211, %212 : vector<8x128xf32>
    %214 = vector.extract_strided_slice %213 {offsets = [0, 0], sizes = [8, 32], strides = [1, 1]} : vector<8x128xf32> to vector<8x32xf32>
    %215 = vector.extract_strided_slice %213 {offsets = [0, 32], sizes = [8, 32], strides = [1, 1]} : vector<8x128xf32> to vector<8x32xf32>
    %216 = vector.extract_strided_slice %213 {offsets = [0, 64], sizes = [8, 32], strides = [1, 1]} : vector<8x128xf32> to vector<8x32xf32>
    %cst_37 = arith.constant 2.000000e+00 : f32
    %217 = vector.broadcast %cst_37 : f32 to vector<8x32xf32>
    %218 = arith.mulf %217, %216 : vector<8x32xf32>
    %cst_38 = arith.constant 1.000000e+00 : f32
    %219 = vector.broadcast %cst_38 : f32 to vector<8x32xf32>
    %220 = arith.subf %218, %219 : vector<8x32xf32>
    %221 = vector.extract_strided_slice %213 {offsets = [0, 96], sizes = [8, 32], strides = [1, 1]} : vector<8x128xf32> to vector<8x32xf32>
    %222 = arith.mulf %215, %201 : vector<8x32xf32>
    %223 = arith.mulf %214, %220 : vector<8x32xf32>
    %224 = arith.addf %222, %223 : vector<8x32xf32>
    %225 = math.tanh %224 : vector<8x32xf32>
    %226 = arith.mulf %221, %225 : vector<8x32xf32>
    %c6_i32 = arith.constant 6 : i32
    %227 = vector.broadcast %c6_i32 : i32 to vector<8x1xi32>
    %228 = arith.cmpi sgt, %2, %227 : vector<8x1xi32>
    %229 = vector.shape_cast %228 : vector<8x1xi1> to vector<8x1xi1>
    %230 = vector.broadcast %229 : vector<8x1xi1> to vector<8x32xi1>
    %231 = arith.select %230, %224, %201 : vector<8x32xi1>, vector<8x32xf32>
    %232 = vector.shape_cast %228 : vector<8x1xi1> to vector<8x1xi1>
    %233 = vector.broadcast %232 : vector<8x1xi1> to vector<8x32xi1>
    %234 = arith.select %233, %226, %204 : vector<8x32xi1>, vector<8x32xf32>
    %235 = vector.extract_strided_slice %20 {offsets = [56, 0], sizes = [8, 128], strides = [1, 1]} : vector<64x128xf32> to vector<8x128xf32>
    %236 = arith.truncf %234 : vector<8x32xf32> to vector<8x32xbf16>
    %cst_39 = arith.constant dense<0.000000e+00> : vector<8x128xf32>
    %237 = tpu.matmul %236, %22, %cst_39 {dimension_numbers = #tpu.dot_dimension_numbers<[1], [0], [0], [1], [0, 0, 1, 1], [], []>} : vector<8x32xbf16>, vector<32x128xbf16>, vector<8x128xf32> -> vector<8x128xf32>
    %238 = arith.addf %235, %237 : vector<8x128xf32>
    %239 = arith.negf %238 : vector<8x128xf32>
    %240 = math.exp %239 : vector<8x128xf32>
    %cst_40 = arith.constant 1.000000e+00 : f32
    %241 = vector.broadcast %cst_40 : f32 to vector<8x128xf32>
    %242 = arith.addf %241, %240 : vector<8x128xf32>
    %243 = arith.divf %241, %242 : vector<8x128xf32>
    %244 = vector.extract_strided_slice %243 {offsets = [0, 0], sizes = [8, 32], strides = [1, 1]} : vector<8x128xf32> to vector<8x32xf32>
    %245 = vector.extract_strided_slice %243 {offsets = [0, 32], sizes = [8, 32], strides = [1, 1]} : vector<8x128xf32> to vector<8x32xf32>
    %246 = vector.extract_strided_slice %243 {offsets = [0, 64], sizes = [8, 32], strides = [1, 1]} : vector<8x128xf32> to vector<8x32xf32>
    %cst_41 = arith.constant 2.000000e+00 : f32
    %247 = vector.broadcast %cst_41 : f32 to vector<8x32xf32>
    %248 = arith.mulf %247, %246 : vector<8x32xf32>
    %cst_42 = arith.constant 1.000000e+00 : f32
    %249 = vector.broadcast %cst_42 : f32 to vector<8x32xf32>
    %250 = arith.subf %248, %249 : vector<8x32xf32>
    %251 = vector.extract_strided_slice %243 {offsets = [0, 96], sizes = [8, 32], strides = [1, 1]} : vector<8x128xf32> to vector<8x32xf32>
    %252 = arith.mulf %245, %231 : vector<8x32xf32>
    %253 = arith.mulf %244, %250 : vector<8x32xf32>
    %254 = arith.addf %252, %253 : vector<8x32xf32>
    %255 = math.tanh %254 : vector<8x32xf32>
    %256 = arith.mulf %251, %255 : vector<8x32xf32>
    %c7_i32 = arith.constant 7 : i32
    %257 = vector.broadcast %c7_i32 : i32 to vector<8x1xi32>
    %258 = arith.cmpi sgt, %2, %257 : vector<8x1xi32>
    %259 = vector.shape_cast %258 : vector<8x1xi1> to vector<8x1xi1>
    %260 = vector.broadcast %259 : vector<8x1xi1> to vector<8x32xi1>
    %261 = arith.select %260, %256, %234 : vector<8x32xi1>, vector<8x32xf32>
    %262 = tpu.iota {dimensions = array<i32: 1>} : vector<8x8xi32>
    %263 = vector.broadcast %3 : vector<8x1xi32> to vector<8x8xi32>
    %264 = arith.cmpi eq, %262, %263 : vector<8x8xi32>
    %cst_43 = arith.constant 1.000000e+00 : f32
    %cst_44 = arith.constant 0.000000e+00 : f32
    %265 = vector.broadcast %cst_43 : f32 to vector<8x8xf32>
    %266 = vector.broadcast %cst_44 : f32 to vector<8x8xf32>
    %267 = arith.select %264, %265, %266 : vector<8x8xi1>, vector<8x8xf32>
    %cst_45 = arith.constant dense<0.000000e+00> : vector<8x32xf32>
    %268 = tpu.matmul %267, %261, %cst_45 {dimension_numbers = #tpu.dot_dimension_numbers<[1], [0], [0], [1], [0, 0, 1, 1], [], []>} : vector<8x8xf32>, vector<8x32xf32>, vector<8x32xf32> -> vector<8x32xf32>
    %269 = vector.extract_strided_slice %268 {offsets = [0, 0], sizes = [7, 32], strides = [1, 1]} : vector<8x32xf32> to vector<7x32xf32>
    %270 = vector.extract_strided_slice %268 {offsets = [1, 0], sizes = [7, 32], strides = [1, 1]} : vector<8x32xf32> to vector<7x32xf32>
    %271 = arith.mulf %269, %270 : vector<7x32xf32>
    %cst_46 = arith.constant dense<0.000000e+00> : vector<7xf32>
    %272 = vector.multi_reduction <add>, %271, %cst_46 [1] : vector<7x32xf32> to vector<7xf32>
    %273 = vector.shape_cast %272 : vector<7xf32> to vector<7x1xf32>
    %274 = arith.mulf %269, %269 : vector<7x32xf32>
    %cst_47 = arith.constant dense<0.000000e+00> : vector<7xf32>
    %275 = vector.multi_reduction <add>, %274, %cst_47 [1] : vector<7x32xf32> to vector<7xf32>
    %276 = vector.shape_cast %275 : vector<7xf32> to vector<7x1xf32>
    %277 = math.sqrt %276 : vector<7x1xf32>
    %278 = arith.mulf %270, %270 : vector<7x32xf32>
    %cst_48 = arith.constant dense<0.000000e+00> : vector<7xf32>
    %279 = vector.multi_reduction <add>, %278, %cst_48 [1] : vector<7x32xf32> to vector<7xf32>
    %280 = vector.shape_cast %279 : vector<7xf32> to vector<7x1xf32>
    %281 = math.sqrt %280 : vector<7x1xf32>
    %282 = arith.mulf %277, %281 : vector<7x1xf32>
    %cst_49 = arith.constant 9.99999993E-9 : f32
    %283 = vector.broadcast %cst_49 : f32 to vector<7x1xf32>
    %284 = arith.maximumf %282, %283 : vector<7x1xf32>
    %285 = arith.divf %273, %284 : vector<7x1xf32>
    %c184 = arith.constant 184 : index
    %c0_50 = arith.constant 0 : index
    %286 = vector.load %arg2[%c184, %c0_50] : memref<248x128xf32, #tpu.memory_space<vmem>>, vector<2x7xf32>
    %c192 = arith.constant 192 : index
    %c0_51 = arith.constant 0 : index
    %287 = vector.load %arg2[%c192, %c0_51] : memref<248x128xf32, #tpu.memory_space<vmem>>, vector<7x32xf32>
    %c200 = arith.constant 200 : index
    %c0_52 = arith.constant 0 : index
    %288 = vector.load %arg2[%c200, %c0_52] : memref<248x128xf32, #tpu.memory_space<vmem>>, vector<1x32xf32>
    %c208 = arith.constant 208 : index
    %c0_53 = arith.constant 0 : index
    %289 = vector.load %arg2[%c208, %c0_53] : memref<248x128xf32, #tpu.memory_space<vmem>>, vector<32x3xf32>
    %c240 = arith.constant 240 : index
    %c0_54 = arith.constant 0 : index
    %290 = vector.load %arg2[%c240, %c0_54] : memref<248x128xf32, #tpu.memory_space<vmem>>, vector<1x3xf32>
    %cst_55 = arith.constant dense<0.000000e+00> : vector<2x1xf32>
    %291 = tpu.matmul %286, %285, %cst_55 {dimension_numbers = #tpu.dot_dimension_numbers<[1], [0], [0], [1], [0, 0, 1, 1], [], []>} : vector<2x7xf32>, vector<7x1xf32>, vector<2x1xf32> -> vector<2x1xf32>
    %cst_56 = arith.constant 0.333333343 : f32
    %292 = vector.broadcast %cst_56 : f32 to vector<2x1xf32>
    %293 = arith.mulf %291, %292 : vector<2x1xf32>
    %294 = vector.broadcast %285 : vector<7x1xf32> to vector<7x32xf32>
    %295 = arith.mulf %294, %287 : vector<7x32xf32>
    %cst_57 = arith.constant dense<0.000000e+00> : vector<2x32xf32>
    %296 = tpu.matmul %286, %295, %cst_57 {dimension_numbers = #tpu.dot_dimension_numbers<[1], [0], [0], [1], [0, 0, 1, 1], [], []>} : vector<2x7xf32>, vector<7x32xf32>, vector<2x32xf32> -> vector<2x32xf32>
    %297 = vector.broadcast %288 : vector<1x32xf32> to vector<2x32xf32>
    %298 = arith.addf %296, %297 : vector<2x32xf32>
    %cst_58 = arith.constant 0.000000e+00 : f32
    %299 = vector.broadcast %cst_58 : f32 to vector<2x32xf32>
    %300 = arith.maximumf %298, %299 : vector<2x32xf32>
    %cst_59 = arith.constant dense<0.000000e+00> : vector<2x3xf32>
    %301 = tpu.matmul %300, %289, %cst_59 {dimension_numbers = #tpu.dot_dimension_numbers<[1], [0], [0], [1], [0, 0, 1, 1], [], []>} : vector<2x32xf32>, vector<32x3xf32>, vector<2x3xf32> -> vector<2x3xf32>
    %302 = vector.broadcast %290 : vector<1x3xf32> to vector<2x3xf32>
    %303 = arith.addf %301, %302 : vector<2x3xf32>
    %cst_60 = arith.constant dense<0xFF800000> : vector<3xf32>
    %304 = vector.multi_reduction <maximumf>, %303, %cst_60 [0] : vector<2x3xf32> to vector<3xf32>
    %305 = vector.shape_cast %304 : vector<3xf32> to vector<1x3xf32>
    %306 = vector.broadcast %305 : vector<1x3xf32> to vector<2x3xf32>
    %307 = arith.subf %303, %306 : vector<2x3xf32>
    %308 = math.exp %307 : vector<2x3xf32>
    %cst_61 = arith.constant dense<0.000000e+00> : vector<3xf32>
    %309 = vector.multi_reduction <add>, %308, %cst_61 [0] : vector<2x3xf32> to vector<3xf32>
    %310 = vector.shape_cast %309 : vector<3xf32> to vector<1x3xf32>
    %311 = vector.broadcast %310 : vector<1x3xf32> to vector<2x3xf32>
    %312 = arith.divf %308, %311 : vector<2x3xf32>
    %cst_62 = arith.constant 0.000000e+00 : f32
    %313 = vector.broadcast %cst_62 : f32 to vector<8x128xf32>
    %c0_63 = arith.constant 0 : index
    %c0_64 = arith.constant 0 : index
    %314 = vector.load %arg3[%c0_63, %c0_64] : memref<8x128xf32, #tpu.memory_space<vmem>>, vector<8x128xf32>
    tpu.vector_store %arg3[%c0_63, %c0_64], %313 {strides = array<i32>} : memref<8x128xf32, #tpu.memory_space<vmem>>, vector<8x128xf32>,
    %c0_65 = arith.constant 0 : index
    %c0_66 = arith.constant 0 : index
    %315 = vector.load %arg3[%c0_65, %c0_66] : memref<8x128xf32, #tpu.memory_space<vmem>>, vector<2x3xf32>
    tpu.vector_store %arg3[%c0_65, %c0_66], %312 {strides = array<i32>} : memref<8x128xf32, #tpu.memory_space<vmem>>, vector<2x3xf32>,
    %c0_67 = arith.constant 0 : index
    %c3 = arith.constant 3 : index
    %316 = vector.load %arg3[%c0_67, %c3] : memref<8x128xf32, #tpu.memory_space<vmem>>, vector<2x1xf32>
    tpu.vector_store %arg3[%c0_67, %c3], %293 {strides = array<i32>} : memref<8x128xf32, #tpu.memory_space<vmem>>, vector<2x1xf32>,
    return
  }
  func.func @transform_0(%arg0: i32) -> (i32, i32) {
    %c0_i32 = arith.constant 0 : i32
    %c0_i32_0 = arith.constant 0 : i32
    %c0_i32_1 = arith.constant 0 : i32
    return %c0_i32, %c0_i32_0 : i32, i32
  }
  func.func @transform_1(%arg0: i32) -> (i32, i32) {
    %c0_i32 = arith.constant 0 : i32
    %c0_i32_0 = arith.constant 0 : i32
    %c0_i32_1 = arith.constant 0 : i32
    return %c0_i32, %c0_i32_0 : i32, i32
  }
  func.func @transform_2(%arg0: i32) -> (i32, i32) {
    %c0_i32 = arith.constant 0 : i32
    %c0_i32_0 = arith.constant 0 : i32
    %c0_i32_1 = arith.constant 0 : i32
    return %c0_i32, %c0_i32_0 : i32, i32
  }
}

</mosaic_0001>

<llo_original>
// kernel: forward.1
$region0: #{forward.1}
  #allocation0 [shape = 'u32[]', space=smem, size = 0x4, offset = 0x4, fixed_abs, tag = 'smem constant byte address 0x4 - core index']
  #allocation1 [shape = 'u32[72,128]{1,0:T(1,128)}', space=vmem, size = 0x9000, scoped, tag = 'internal scratch']
  %s0 = inlined_call_operand.vmem [shape: s32[80,1], index: 0, kind: input, shape index: {}]
  %s1 = inlined_call_operand.hbm [shape: f32[248,128], index: 1, kind: input, shape index: {}]
  %s2 = inlined_call_operand.vmem [shape: f32[8,128], index: 2, kind: output, shape index: {}]
  %s3 = sld [smem:[#allocation0]]
  $region22: #{forward.1} parent=0
    _
  %s5 = ssub.s32 1, %s3
  %s6 = scalar_select 0, %s5, %s3
  $region1: #{forward.1} parent=0
    #allocation2 [shape = 'u8[126976]{0}', space=vmem, size = 0x1f000, scoped, tag = 'input window, operand 1, single buffered']
    #allocation3 [shape = 's32[1]{0}', space=sflag, size = 0x4, scoped, tag = 'scoped memory for forward.1']
    %7 = vsyncpa [#allocation3], 0
    // Predicated region
    $region2: #{forward.1} parent=1 // pred_check
      _
    $region3: #{forward.1} parent=1 // pred_check_branch
      %9 = sbr.rel (0) target = $region5
    $region4: #{forward.1} parent=1 // pred_region
      _
    $region5: #{forward.1} parent=1 // pred_fallthru
      _
    // Predicated region
    $region6: #{forward.1} parent=1 // pred_check
      _
    $region7: #{forward.1} parent=1 // pred_check_branch
      %11 = sbr.rel (0) target = $region9
    $region8: #{forward.1} parent=1 // pred_region
      %13 = vsyncadd [#allocation3], 0
      %s14 = sshll.u32 %s1, 4
      %s15 = int_to_ptr.hbm [resolvable:$true] %s14
      %s16 = sshll.u32 [#allocation2], 4
      %s17 = int_to_ptr.vmem [resolvable:$true] %s16
      %22 = dma.hbm_to_vmem [thread:$0]  %s15, 3968, %s17, [#allocation3], 128, 128, 8
    $region9: #{forward.1} parent=1 // pred_fallthru
      _
    // Predicated region
    $region10: #{forward.1} parent=1 // pred_check
      _
    $region11: #{forward.1} parent=1 // pred_check_branch
      %24 = sbr.rel (0) target = $region13
    $region12: #{forward.1} parent=1 // pred_region
      %26 = dma.done [#allocation3], 3968
    $region13: #{forward.1} parent=1 // pred_fallthru
      _
    %v28 = vld [vmem:[%s0] sm:$0xff]
    %v29 = vld [vmem:[%s0 + $0x8] sm:$0xff]
    %v30 = vld [vmem:[%s0 + $0x10] sm:$0xff]
    %v31 = vld [vmem:[%s0 + $0x18] sm:$0xff]
    %v32 = vld [vmem:[%s0 + $0x20] sm:$0xff]
    %v33 = vld [vmem:[%s0 + $0x28] sm:$0xff]
    %v34 = vld [vmem:[%s0 + $0x30] sm:$0xff]
    %v35 = vld [vmem:[%s0 + $0x38] sm:$0xff]
    %v36 = vld [vmem:[%s0 + $0x40] sm:$0xff]
    %v37 = vld [vmem:[%s0 + $0x48] sm:$0xff]
    %v38 = vlaneseq
    %v39 = vand.u32 %v38, 127
    %40 = vset.pattern.permute.xlu0 0
    %41 = vperm.xlu0 %40, %v28
    %v42 = vpop.permute.xlu0 %41
    %43 = vset.pattern.permute.xlu0 0
    %44 = vperm.xlu0 %43, %v29
    %v45 = vpop.permute.xlu0 %44
    %46 = vset.pattern.permute.xlu0 0
    %47 = vperm.xlu0 %46, %v30
    %v48 = vpop.permute.xlu0 %47
    %49 = vset.pattern.permute.xlu0 0
    %50 = vperm.xlu0 %49, %v31
    %v51 = vpop.permute.xlu0 %50
    %52 = vset.pattern.permute.xlu0 0
    %53 = vperm.xlu0 %52, %v32
    %v54 = vpop.permute.xlu0 %53
    %55 = vset.pattern.permute.xlu0 0
    %56 = vperm.xlu0 %55, %v33
    %v57 = vpop.permute.xlu0 %56
    %58 = vset.pattern.permute.xlu0 0
    %59 = vperm.xlu0 %58, %v34
    %v60 = vpop.permute.xlu0 %59
    %61 = vset.pattern.permute.xlu0 0
    %62 = vperm.xlu0 %61, %v35
    %v63 = vpop.permute.xlu0 %62
    %vm64 = vcmp.eq.s32.totalorder %v39, %v42
    %vm65 = vcmp.eq.s32.totalorder %v39, %v45
    %vm66 = vcmp.eq.s32.totalorder %v39, %v48
    %vm67 = vcmp.eq.s32.totalorder %v39, %v51
    %vm68 = vcmp.eq.s32.totalorder %v39, %v54
    %vm69 = vcmp.eq.s32.totalorder %v39, %v57
    %vm70 = vcmp.eq.s32.totalorder %v39, %v60
    %vm71 = vcmp.eq.s32.totalorder %v39, %v63
    %v72 = vsel %vm64, 1.0, 0.0
    %v73 = vsel %vm65, 1.0, 0.0
    %v74 = vsel %vm66, 1.0, 0.0
    %v75 = vsel %vm67, 1.0, 0.0
    %v76 = vsel %vm68, 1.0, 0.0
    %v77 = vsel %vm69, 1.0, 0.0
    %v78 = vsel %vm70, 1.0, 0.0
    %v79 = vsel %vm71, 1.0, 0.0
    %v80 = vpack.c.bf16 %v73, %v72
    %v81 = vpack.c.bf16 %v75, %v74
    %v82 = vpack.c.bf16 %v77, %v76
    %v83 = vpack.c.bf16 %v79, %v78
    %v84 = vld [vmem:[#allocation2] sm:$0xff]
    %v85 = vld [vmem:[#allocation2 + $0x8] sm:$0xff]
    %v86 = vld [vmem:[#allocation2 + $0x10] sm:$0xff]
    %v87 = vld [vmem:[#allocation2 + $0x18] sm:$0xff]
    %v88 = vld [vmem:[#allocation2 + $0x20] sm:$0xff]
    %v89 = vld [vmem:[#allocation2 + $0x28] sm:$0xff]
    %v90 = vld [vmem:[#allocation2 + $0x30] sm:$0xff]
    %v91 = vld [vmem:[#allocation2 + $0x38] sm:$0xff]
    %v92 = vld [vmem:[#allocation2 + $0x40] sm:$0xff]
    %v93 = vld [vmem:[#allocation2 + $0x48] sm:$0xff]
    %v94 = vld [vmem:[#allocation2 + $0x50] sm:$0xff]
    %v95 = vld [vmem:[#allocation2 + $0x58] sm:$0xff]
    %v96 = vld [vmem:[#allocation2 + $0x60] sm:$0xff]
    %v97 = vld [vmem:[#allocation2 + $0x68] sm:$0xff]
    %v98 = vld [vmem:[#allocation2 + $0x70] sm:$0xff]
    %v99 = vld [vmem:[#allocation2 + $0x78] sm:$0xff]
    %v100 = vpack.c.bf16 %v85, %v84
    %v101 = vpack.c.bf16 %v87, %v86
    %v102 = vpack.c.bf16 %v89, %v88
    %v103 = vpack.c.bf16 %v91, %v90
    %v104 = vpack.c.bf16 %v93, %v92
    %v105 = vpack.c.bf16 %v95, %v94
    %v106 = vpack.c.bf16 %v97, %v96
    %v107 = vpack.c.bf16 %v99, %v98
    %108 = vmatpush.bf16.msra.mxu0 %v107
    %109 = vmatpush.bf16.msra.mxu0 %v106
    %110 = vmatpush.bf16.msra.mxu0 %v105
    %111 = vmatpush.bf16.msra.mxu0 %v104
    %112 = vmatpush.bf16.msra.mxu0 %v103
    %113 = vmatpush.bf16.msra.mxu0 %v102
    %114 = vmatpush.bf16.msra.mxu0 %v101
    %115 = vmatpush.bf16.msra.mxu0 %v100
    %116 = vmatmul.bf16.gmra.mxu0 %v80
    %v117 = vpop.f32.mrf.mxu0
    %v118 = vadd.f32 0.0, %v117
    %v119 = vpop.f32.mrf.mxu0
    %v120 = vadd.f32 0.0, %v119
    %121 = vmatmul.bf16.gmra.mxu0 %v81
    %v122 = vpop.f32.mrf.mxu0
    %v123 = vadd.f32 0.0, %v122
    %v124 = vpop.f32.mrf.mxu0
    %v125 = vadd.f32 0.0, %v124
    %126 = vmatmul.bf16.gmra.mxu0 %v82
    %v127 = vpop.f32.mrf.mxu0
    %v128 = vadd.f32 0.0, %v127
    %v129 = vpop.f32.mrf.mxu0
    %v130 = vadd.f32 0.0, %v129
    %131 = vmatmul.bf16.gmra.mxu0 %v83
    %v132 = vpop.f32.mrf.mxu0
    %v133 = vadd.f32 0.0, %v132
    %v134 = vpop.f32.mrf.mxu0
    %v135 = vadd.f32 0.0, %v134
    %136 = vdwg.mxu0
    %v137 = vld [vmem:[#allocation2 + $0x80] sm:$0xff]
    %v138 = vld [vmem:[#allocation2 + $0x88] sm:$0xff]
    %v139 = vld [vmem:[#allocation2 + $0xb0] sm:$0x1]
    %v140 = vpack.c.bf16 %v120, %v118
    %v141 = vpack.c.bf16 %v125, %v123
    %v142 = vpack.c.bf16 %v130, %v128
    %v143 = vpack.c.bf16 %v135, %v133
    %v144 = vpack.c.bf16 %v138, %v137
    %v145 = vperm.slane %v139, 0
    %vm146 = vcmask 130048
    %v148 = vsel %vm146, %v140, 0
    %v151 = vsel %vm146, %v141, 0
    %v154 = vsel %vm146, %v142, 0
    %v157 = vsel %vm146, %v143, 0
    %159 = vmatpush.bf16.msra.mxu0 0
    %160 = vmatpush.bf16.msra.mxu0 0
    %161 = vmatpush.bf16.msra.mxu0 0
    %162 = vmatpush.bf16.msra.mxu0 0
    %163 = vmatpush.bf16.msra.mxu0 0
    %164 = vmatpush.bf16.msra.mxu0 0
    %165 = vmatpush.bf16.msra.mxu0 0
    %166 = vmatpush.bf16.msra.mxu0 %v144
    %167 = vmatmul.bf16.gmra.mxu0 %v148
    %v168 = vpop.f32.mrf.mxu0
    %v169 = vadd.f32 %v145, %v168
    %v170 = vpop.f32.mrf.mxu0
    %v171 = vadd.f32 %v145, %v170
    %172 = vmatmul.bf16.gmra.mxu0 %v151
    %v173 = vpop.f32.mrf.mxu0
    %v174 = vadd.f32 %v145, %v173
    %v175 = vpop.f32.mrf.mxu0
    %v176 = vadd.f32 %v145, %v175
    %177 = vmatmul.bf16.gmra.mxu0 %v154
    %v178 = vpop.f32.mrf.mxu0
    %v179 = vadd.f32 %v145, %v178
    %v180 = vpop.f32.mrf.mxu0
    %v181 = vadd.f32 %v145, %v180
    %182 = vmatmul.bf16.gmra.mxu0 %v157
    %v183 = vpop.f32.mrf.mxu0
    %v184 = vadd.f32 %v145, %v183
    %v185 = vpop.f32.mrf.mxu0
    %v186 = vadd.f32 %v145, %v185
    %187 = vdwg.mxu0
    %v188 = vld [vmem:[#allocation2 + $0x90] sm:$0xff]
    %v189 = vld [vmem:[#allocation2 + $0x98] sm:$0xff]
    %v190 = vld [vmem:[#allocation2 + $0xa0] sm:$0xff]
    %v191 = vld [vmem:[#allocation2 + $0xa8] sm:$0xff]
    %v192 = vpack.c.bf16 %v189, %v188
    %v193 = vpack.c.bf16 %v191, %v190
    %vm194 = vcmask 261120
    %v196 = vsel %vm194, 0, 0
    %198 = vmatpush.bf16.msra.mxu0 0
    %199 = vmatpush.bf16.msra.mxu0 0
    %200 = vmatpush.bf16.msra.mxu0 0
    %201 = vmatpush.bf16.msra.mxu0 0
    %202 = vmatpush.bf16.msra.mxu0 0
    %203 = vmatpush.bf16.msra.mxu0 0
    %204 = vmatpush.bf16.msra.mxu0 %v193
    %205 = vmatpush.bf16.msra.mxu0 %v192
    %206 = vmatmul.bf16.gmra.mxu0 %v196
    %v207 = vpop.f32.mrf.mxu0
    %v208 = vadd.f32 0.0, %v207
    %v209 = vpop.f32.mrf.mxu0
    %210 = vdwg.mxu0
    %v211 = vadd.f32 %v169, %v208
    %v212 = vxor.u32 %v211, 2147483648
    %v213 = vmul.f32 %v212, 1.442695
    %v214 = vpow.pop %v213
    %v215 = vadd.f32 %v214, 1.0
    %v216 = vrcp.pop %v215
    %v217 = vmul.f32 %v215, %v216
    %v218 = vsub.f32 1.0, %v217
    %v219 = vmul.f32 %v216, %v218
    %v220 = vadd.f32 %v216, %v219
    %vm221 = vweird.f32 %v215
    %vm222 = vweird.f32 %v216
    %vm223 = vmor %vm221, %vm222
    %v224 = vsel %vm223, %v216, %v220
    %v225 = vand.u32 2147483647, %v215
    %vm226 = vcmp.eq.f32.partialorder %v225, 8.507059e+37
    %v227 = vand.u32 %v215, 2147483648
    %v228 = vor.u32 1.1754944e-38, %v227
    %v229 = vsel %vm226, %v228, %v224
    %v230 = vmul.f32 1.0, %v229
    %v231 = vmul.f32 %v230, 2.0
    %v232 = vsub.f32 %v231, 1.0
    %v233 = vmul.f32 %v230, 0.0
    %235 = vrot.lane.b32.xlu0 %v232, 64
    %v236 = vpop.permute.xlu0 %235
    %v238 = vmul.f32 %v230, %v236
    %240 = vrot.lane.b32.xlu0 %v238, 32
    %v241 = vpop.permute.xlu0 %240
    %v243 = vadd.f32 %v233, %v241
    %v244 = vtanh.pop %v243
    %246 = vrot.lane.b32.xlu0 %v244, 64
    %v247 = vpop.permute.xlu0 %246
    %v249 = vmul.f32 %v230, %v247
    %vm250 = vcmp.gt.s32.totalorder %v36, 0
    %v251 = vsel %vm250, 1, 0
    %252 = vset.pattern.permute.xlu0 0
    %253 = vperm.xlu0 %252, %v251
    %v254 = vpop.permute.xlu0 %253
    %vm255 = vcmp.eq.s32.totalorder %v254, 1
    %v256 = vsel %vm255, %v243, 0.0
    %v257 = vsel %vm255, %v249, 0.0
    %v258 = vpack.c.bf16 %v257, %v257
    %260 = vrot.lane.b32.xlu0 %v258, 32
    %v261 = vpop.permute.xlu0 %260
    %v263 = vsel %vm194, %v261, 0
    %265 = vmatpush.bf16.msra.mxu0 0
    %266 = vmatpush.bf16.msra.mxu0 0
    %267 = vmatpush.bf16.msra.mxu0 0
    %268 = vmatpush.bf16.msra.mxu0 0
    %269 = vmatpush.bf16.msra.mxu0 0
    %270 = vmatpush.bf16.msra.mxu0 0
    %271 = vmatpush.bf16.msra.mxu0 %v193
    %272 = vmatpush.bf16.msra.mxu0 %v192
    %273 = vmatmul.bf16.gmra.mxu0 %v263
    %v274 = vpop.f32.mrf.mxu0
    %v275 = vadd.f32 0.0, %v274
    %v276 = vpop.f32.mrf.mxu0
    %277 = vdwg.mxu0
    %v278 = vadd.f32 %v171, %v275
    %v279 = vxor.u32 %v278, 2147483648
    %v280 = vmul.f32 %v279, 1.442695
    %v281 = vpow.pop %v280
    %v282 = vadd.f32 %v281, 1.0
    %v283 = vrcp.pop %v282
    %v284 = vmul.f32 %v282, %v283
    %v285 = vsub.f32 1.0, %v284
    %v286 = vmul.f32 %v283, %v285
    %v287 = vadd.f32 %v283, %v286
    %vm288 = vweird.f32 %v282
    %vm289 = vweird.f32 %v283
    %vm290 = vmor %vm288, %vm289
    %v291 = vsel %vm290, %v283, %v287
    %v292 = vand.u32 2147483647, %v282
    %vm293 = vcmp.eq.f32.partialorder %v292, 8.507059e+37
    %v294 = vand.u32 %v282, 2147483648
    %v295 = vor.u32 1.1754944e-38, %v294
    %v296 = vsel %vm293, %v295, %v291
    %v297 = vmul.f32 1.0, %v296
    %v298 = vmul.f32 %v297, 2.0
    %v299 = vsub.f32 %v298, 1.0
    %v300 = vmul.f32 %v297, %v256
    %302 = vrot.lane.b32.xlu0 %v299, 64
    %v303 = vpop.permute.xlu0 %302
    %v305 = vmul.f32 %v297, %v303
    %307 = vrot.lane.b32.xlu0 %v305, 32
    %v308 = vpop.permute.xlu0 %307
    %v310 = vadd.f32 %v300, %v308
    %v311 = vtanh.pop %v310
    %313 = vrot.lane.b32.xlu0 %v311, 64
    %v314 = vpop.permute.xlu0 %313
    %v316 = vmul.f32 %v297, %v314
    %vm317 = vcmp.gt.s32.totalorder %v36, 1
    %v318 = vsel %vm317, 1, 0
    %319 = vset.pattern.permute.xlu0 0
    %320 = vperm.xlu0 %319, %v318
    %v321 = vpop.permute.xlu0 %320
    %vm322 = vcmp.eq.s32.totalorder %v321, 1
    %v323 = vsel %vm322, %v310, %v256
    %v324 = vsel %vm322, %v316, %v257
    %v325 = vpack.c.bf16 %v324, %v324
    %327 = vrot.lane.b32.xlu0 %v325, 32
    %v328 = vpop.permute.xlu0 %327
    %v330 = vsel %vm194, %v328, 0
    %332 = vmatpush.bf16.msra.mxu0 0
    %333 = vmatpush.bf16.msra.mxu0 0
    %334 = vmatpush.bf16.msra.mxu0 0
    %335 = vmatpush.bf16.msra.mxu0 0
    %336 = vmatpush.bf16.msra.mxu0 0
    %337 = vmatpush.bf16.msra.mxu0 0
    %338 = vmatpush.bf16.msra.mxu0 %v193
    %339 = vmatpush.bf16.msra.mxu0 %v192
    %340 = vmatmul.bf16.gmra.mxu0 %v330
    %v341 = vpop.f32.mrf.mxu0
    %v342 = vadd.f32 0.0, %v341
    %v343 = vpop.f32.mrf.mxu0
    %344 = vdwg.mxu0
    %v345 = vadd.f32 %v174, %v342
    %v346 = vxor.u32 %v345, 2147483648
    %v347 = vmul.f32 %v346, 1.442695
    %v348 = vpow.pop %v347
    %v349 = vadd.f32 %v348, 1.0
    %v350 = vrcp.pop %v349
    %v351 = vmul.f32 %v349, %v350
    %v352 = vsub.f32 1.0, %v351
    %v353 = vmul.f32 %v350, %v352
    %v354 = vadd.f32 %v350, %v353
    %vm355 = vweird.f32 %v349
    %vm356 = vweird.f32 %v350
    %vm357 = vmor %vm355, %vm356
    %v358 = vsel %vm357, %v350, %v354
    %v359 = vand.u32 2147483647, %v349
    %vm360 = vcmp.eq.f32.partialorder %v359, 8.507059e+37
    %v361 = vand.u32 %v349, 2147483648
    %v362 = vor.u32 1.1754944e-38, %v361
    %v363 = vsel %vm360, %v362, %v358
    %v364 = vmul.f32 1.0, %v363
    %v365 = vmul.f32 %v364, 2.0
    %v366 = vsub.f32 %v365, 1.0
    %v367 = vmul.f32 %v364, %v323
    %369 = vrot.lane.b32.xlu0 %v366, 64
    %v370 = vpop.permute.xlu0 %369
    %v372 = vmul.f32 %v364, %v370
    %374 = vrot.lane.b32.xlu0 %v372, 32
    %v375 = vpop.permute.xlu0 %374
    %v377 = vadd.f32 %v367, %v375
    %v378 = vtanh.pop %v377
    %380 = vrot.lane.b32.xlu0 %v378, 64
    %v381 = vpop.permute.xlu0 %380
    %v383 = vmul.f32 %v364, %v381
    %vm384 = vcmp.gt.s32.totalorder %v36, 2
    %v385 = vsel %vm384, 1, 0
    %386 = vset.pattern.permute.xlu0 0
    %387 = vperm.xlu0 %386, %v385
    %v388 = vpop.permute.xlu0 %387
    %vm389 = vcmp.eq.s32.totalorder %v388, 1
    %v390 = vsel %vm389, %v377, %v323
    %v391 = vsel %vm389, %v383, %v324
    %v392 = vpack.c.bf16 %v391, %v391
    %394 = vrot.lane.b32.xlu0 %v392, 32
    %v395 = vpop.permute.xlu0 %394
    %v397 = vsel %vm194, %v395, 0
    %399 = vmatpush.bf16.msra.mxu0 0
    %400 = vmatpush.bf16.msra.mxu0 0
    %401 = vmatpush.bf16.msra.mxu0 0
    %402 = vmatpush.bf16.msra.mxu0 0
    %403 = vmatpush.bf16.msra.mxu0 0
    %404 = vmatpush.bf16.msra.mxu0 0
    %405 = vmatpush.bf16.msra.mxu0 %v193
    %406 = vmatpush.bf16.msra.mxu0 %v192
    %407 = vmatmul.bf16.gmra.mxu0 %v397
    %v408 = vpop.f32.mrf.mxu0
    %v409 = vadd.f32 0.0, %v408
    %v410 = vpop.f32.mrf.mxu0
    %411 = vdwg.mxu0
    %v412 = vadd.f32 %v176, %v409
    %v413 = vxor.u32 %v412, 2147483648
    %v414 = vmul.f32 %v413, 1.442695
    %v415 = vpow.pop %v414
    %v416 = vadd.f32 %v415, 1.0
    %v417 = vrcp.pop %v416
    %v418 = vmul.f32 %v416, %v417
    %v419 = vsub.f32 1.0, %v418
    %v420 = vmul.f32 %v417, %v419
    %v421 = vadd.f32 %v417, %v420
    %vm422 = vweird.f32 %v416
    %vm423 = vweird.f32 %v417
    %vm424 = vmor %vm422, %vm423
    %v425 = vsel %vm424, %v417, %v421
    %v426 = vand.u32 2147483647, %v416
    %vm427 = vcmp.eq.f32.partialorder %v426, 8.507059e+37
    %v428 = vand.u32 %v416, 2147483648
    %v429 = vor.u32 1.1754944e-38, %v428
    %v430 = vsel %vm427, %v429, %v425
    %v431 = vmul.f32 1.0, %v430
    %v432 = vmul.f32 %v431, 2.0
    %v433 = vsub.f32 %v432, 1.0
    %v434 = vmul.f32 %v431, %v390
    %436 = vrot.lane.b32.xlu0 %v433, 64
    %v437 = vpop.permute.xlu0 %436
    %v439 = vmul.f32 %v431, %v437
    %441 = vrot.lane.b32.xlu0 %v439, 32
    %v442 = vpop.permute.xlu0 %441
    %v444 = vadd.f32 %v434, %v442
    %v445 = vtanh.pop %v444
    %447 = vrot.lane.b32.xlu0 %v445, 64
    %v448 = vpop.permute.xlu0 %447
    %v450 = vmul.f32 %v431, %v448
    %vm451 = vcmp.gt.s32.totalorder %v36, 3
    %v452 = vsel %vm451, 1, 0
    %453 = vset.pattern.permute.xlu0 0
    %454 = vperm.xlu0 %453, %v452
    %v455 = vpop.permute.xlu0 %454
    %vm456 = vcmp.eq.s32.totalorder %v455, 1
    %v457 = vsel %vm456, %v444, %v390
    %v458 = vsel %vm456, %v450, %v391
    %v459 = vpack.c.bf16 %v458, %v458
    %461 = vrot.lane.b32.xlu0 %v459, 32
    %v462 = vpop.permute.xlu0 %461
    %v464 = vsel %vm194, %v462, 0
    %466 = vmatpush.bf16.msra.mxu0 0
    %467 = vmatpush.bf16.msra.mxu0 0
    %468 = vmatpush.bf16.msra.mxu0 0
    %469 = vmatpush.bf16.msra.mxu0 0
    %470 = vmatpush.bf16.msra.mxu0 0
    %471 = vmatpush.bf16.msra.mxu0 0
    %472 = vmatpush.bf16.msra.mxu0 %v193
    %473 = vmatpush.bf16.msra.mxu0 %v192
    %474 = vmatmul.bf16.gmra.mxu0 %v464
    %v475 = vpop.f32.mrf.mxu0
    %v476 = vadd.f32 0.0, %v475
    %v477 = vpop.f32.mrf.mxu0
    %478 = vdwg.mxu0
    %v479 = vadd.f32 %v179, %v476
    %v480 = vxor.u32 %v479, 2147483648
    %v481 = vmul.f32 %v480, 1.442695
    %v482 = vpow.pop %v481
    %v483 = vadd.f32 %v482, 1.0
    %v484 = vrcp.pop %v483
    %v485 = vmul.f32 %v483, %v484
    %v486 = vsub.f32 1.0, %v485
    %v487 = vmul.f32 %v484, %v486
    %v488 = vadd.f32 %v484, %v487
    %vm489 = vweird.f32 %v483
    %vm490 = vweird.f32 %v484
    %vm491 = vmor %vm489, %vm490
    %v492 = vsel %vm491, %v484, %v488
    %v493 = vand.u32 2147483647, %v483
    %vm494 = vcmp.eq.f32.partialorder %v493, 8.507059e+37
    %v495 = vand.u32 %v483, 2147483648
    %v496 = vor.u32 1.1754944e-38, %v495
    %v497 = vsel %vm494, %v496, %v492
    %v498 = vmul.f32 1.0, %v497
    %v499 = vmul.f32 %v498, 2.0
    %v500 = vsub.f32 %v499, 1.0
    %v501 = vmul.f32 %v498, %v457
    %503 = vrot.lane.b32.xlu0 %v500, 64
    %v504 = vpop.permute.xlu0 %503
    %v506 = vmul.f32 %v498, %v504
    %508 = vrot.lane.b32.xlu0 %v506, 32
    %v509 = vpop.permute.xlu0 %508
    %v511 = vadd.f32 %v501, %v509
    %v512 = vtanh.pop %v511
    %514 = vrot.lane.b32.xlu0 %v512, 64
    %v515 = vpop.permute.xlu0 %514
    %v517 = vmul.f32 %v498, %v515
    %vm518 = vcmp.gt.s32.totalorder %v36, 4
    %v519 = vsel %vm518, 1, 0
    %520 = vset.pattern.permute.xlu0 0
    %521 = vperm.xlu0 %520, %v519
    %v522 = vpop.permute.xlu0 %521
    %vm523 = vcmp.eq.s32.totalorder %v522, 1
    %v524 = vsel %vm523, %v511, %v457
    %v525 = vsel %vm523, %v517, %v458
    %v526 = vpack.c.bf16 %v525, %v525
    %528 = vrot.lane.b32.xlu0 %v526, 32
    %v529 = vpop.permute.xlu0 %528
    %v531 = vsel %vm194, %v529, 0
    %533 = vmatpush.bf16.msra.mxu0 0
    %534 = vmatpush.bf16.msra.mxu0 0
    %535 = vmatpush.bf16.msra.mxu0 0
    %536 = vmatpush.bf16.msra.mxu0 0
    %537 = vmatpush.bf16.msra.mxu0 0
    %538 = vmatpush.bf16.msra.mxu0 0
    %539 = vmatpush.bf16.msra.mxu0 %v193
    %540 = vmatpush.bf16.msra.mxu0 %v192
    %541 = vmatmul.bf16.gmra.mxu0 %v531
    %v542 = vpop.f32.mrf.mxu0
    %v543 = vadd.f32 0.0, %v542
    %v544 = vpop.f32.mrf.mxu0
    %545 = vdwg.mxu0
    %v546 = vadd.f32 %v181, %v543
    %v547 = vxor.u32 %v546, 2147483648
    %v548 = vmul.f32 %v547, 1.442695
    %v549 = vpow.pop %v548
    %v550 = vadd.f32 %v549, 1.0
    %v551 = vrcp.pop %v550
    %v552 = vmul.f32 %v550, %v551
    %v553 = vsub.f32 1.0, %v552
    %v554 = vmul.f32 %v551, %v553
    %v555 = vadd.f32 %v551, %v554
    %vm556 = vweird.f32 %v550
    %vm557 = vweird.f32 %v551
    %vm558 = vmor %vm556, %vm557
    %v559 = vsel %vm558, %v551, %v555
    %v560 = vand.u32 2147483647, %v550
    %vm561 = vcmp.eq.f32.partialorder %v560, 8.507059e+37
    %v562 = vand.u32 %v550, 2147483648
    %v563 = vor.u32 1.1754944e-38, %v562
    %v564 = vsel %vm561, %v563, %v559
    %v565 = vmul.f32 1.0, %v564
    %v566 = vmul.f32 %v565, 2.0
    %v567 = vsub.f32 %v566, 1.0
    %v568 = vmul.f32 %v565, %v524
    %570 = vrot.lane.b32.xlu0 %v567, 64
    %v571 = vpop.permute.xlu0 %570
    %v573 = vmul.f32 %v565, %v571
    %575 = vrot.lane.b32.xlu0 %v573, 32
    %v576 = vpop.permute.xlu0 %575
    %v578 = vadd.f32 %v568, %v576
    %v579 = vtanh.pop %v578
    %581 = vrot.lane.b32.xlu0 %v579, 64
    %v582 = vpop.permute.xlu0 %581
    %v584 = vmul.f32 %v565, %v582
    %vm585 = vcmp.gt.s32.totalorder %v36, 5
    %v586 = vsel %vm585, 1, 0
    %587 = vset.pattern.permute.xlu0 0
    %588 = vperm.xlu0 %587, %v586
    %v589 = vpop.permute.xlu0 %588
    %vm590 = vcmp.eq.s32.totalorder %v589, 1
    %v591 = vsel %vm590, %v578, %v524
    %v592 = vsel %vm590, %v584, %v525
    %v593 = vpack.c.bf16 %v592, %v592
    %595 = vrot.lane.b32.xlu0 %v593, 32
    %v596 = vpop.permute.xlu0 %595
    %v598 = vsel %vm194, %v596, 0
    %600 = vmatpush.bf16.msra.mxu0 0
    %601 = vmatpush.bf16.msra.mxu0 0
    %602 = vmatpush.bf16.msra.mxu0 0
    %603 = vmatpush.bf16.msra.mxu0 0
    %604 = vmatpush.bf16.msra.mxu0 0
    %605 = vmatpush.bf16.msra.mxu0 0
    %606 = vmatpush.bf16.msra.mxu0 %v193
    %607 = vmatpush.bf16.msra.mxu0 %v192
    %608 = vmatmul.bf16.gmra.mxu0 %v598
    %v609 = vpop.f32.mrf.mxu0
    %v610 = vadd.f32 0.0, %v609
    %v611 = vpop.f32.mrf.mxu0
    %612 = vdwg.mxu0
    %v613 = vadd.f32 %v184, %v610
    %v614 = vxor.u32 %v613, 2147483648
    %v615 = vmul.f32 %v614, 1.442695
    %v616 = vpow.pop %v615
    %v617 = vadd.f32 %v616, 1.0
    %v618 = vrcp.pop %v617
    %v619 = vmul.f32 %v617, %v618
    %v620 = vsub.f32 1.0, %v619
    %v621 = vmul.f32 %v618, %v620
    %v622 = vadd.f32 %v618, %v621
    %vm623 = vweird.f32 %v617
    %vm624 = vweird.f32 %v618
    %vm625 = vmor %vm623, %vm624
    %v626 = vsel %vm625, %v618, %v622
    %v627 = vand.u32 2147483647, %v617
    %vm628 = vcmp.eq.f32.partialorder %v627, 8.507059e+37
    %v629 = vand.u32 %v617, 2147483648
    %v630 = vor.u32 1.1754944e-38, %v629
    %v631 = vsel %vm628, %v630, %v626
    %v632 = vmul.f32 1.0, %v631
    %v633 = vmul.f32 %v632, 2.0
    %v634 = vsub.f32 %v633, 1.0
    %v635 = vmul.f32 %v632, %v591
    %637 = vrot.lane.b32.xlu0 %v634, 64
    %v638 = vpop.permute.xlu0 %637
    %v640 = vmul.f32 %v632, %v638
    %642 = vrot.lane.b32.xlu0 %v640, 32
    %v643 = vpop.permute.xlu0 %642
    %v645 = vadd.f32 %v635, %v643
    %v646 = vtanh.pop %v645
    %648 = vrot.lane.b32.xlu0 %v646, 64
    %v649 = vpop.permute.xlu0 %648
    %v651 = vmul.f32 %v632, %v649
    %vm652 = vcmp.gt.s32.totalorder %v36, 6
    %v653 = vsel %vm652, 1, 0
    %654 = vset.pattern.permute.xlu0 0
    %655 = vperm.xlu0 %654, %v653
    %v656 = vpop.permute.xlu0 %655
    %vm657 = vcmp.eq.s32.totalorder %v656, 1
    %v658 = vsel %vm657, %v645, %v591
    %v659 = vsel %vm657, %v651, %v592
    %v660 = vpack.c.bf16 %v659, %v659
    %662 = vrot.lane.b32.xlu0 %v660, 32
    %v663 = vpop.permute.xlu0 %662
    %v665 = vsel %vm194, %v663, 0
    %667 = vmatpush.bf16.msra.mxu0 0
    %668 = vmatpush.bf16.msra.mxu0 0
    %669 = vmatpush.bf16.msra.mxu0 0
    %670 = vmatpush.bf16.msra.mxu0 0
    %671 = vmatpush.bf16.msra.mxu0 0
    %672 = vmatpush.bf16.msra.mxu0 0
    %673 = vmatpush.bf16.msra.mxu0 %v193
    %674 = vmatpush.bf16.msra.mxu0 %v192
    %675 = vmatmul.bf16.gmra.mxu0 %v665
    %v676 = vpop.f32.mrf.mxu0
    %v677 = vadd.f32 0.0, %v676
    %v678 = vpop.f32.mrf.mxu0
    %679 = vdwg.mxu0
    %v680 = vadd.f32 %v186, %v677
    %v681 = vxor.u32 %v680, 2147483648
    %v682 = vmul.f32 %v681, 1.442695
    %v683 = vpow.pop %v682
    %v684 = vadd.f32 %v683, 1.0
    %v685 = vrcp.pop %v684
    %v686 = vmul.f32 %v684, %v685
    %v687 = vsub.f32 1.0, %v686
    %v688 = vmul.f32 %v685, %v687
    %v689 = vadd.f32 %v685, %v688
    %vm690 = vweird.f32 %v684
    %vm691 = vweird.f32 %v685
    %vm692 = vmor %vm690, %vm691
    %v693 = vsel %vm692, %v685, %v689
    %v694 = vand.u32 2147483647, %v684
    %vm695 = vcmp.eq.f32.partialorder %v694, 8.507059e+37
    %v696 = vand.u32 %v684, 2147483648
    %v697 = vor.u32 1.1754944e-38, %v696
    %v698 = vsel %vm695, %v697, %v693
    %v699 = vmul.f32 1.0, %v698
    %v700 = vmul.f32 %v699, 2.0
    %v701 = vsub.f32 %v700, 1.0
    %v702 = vmul.f32 %v699, %v658
    %704 = vrot.lane.b32.xlu0 %v701, 64
    %v705 = vpop.permute.xlu0 %704
    %v707 = vmul.f32 %v699, %v705
    %709 = vrot.lane.b32.xlu0 %v707, 32
    %v710 = vpop.permute.xlu0 %709
    %v712 = vadd.f32 %v702, %v710
    %v713 = vtanh.pop %v712
    %715 = vrot.lane.b32.xlu0 %v713, 64
    %v716 = vpop.permute.xlu0 %715
    %v718 = vmul.f32 %v699, %v716
    %vm719 = vcmp.gt.s32.totalorder %v36, 7
    %v720 = vsel %vm719, 1, 0
    %721 = vset.pattern.permute.xlu0 0
    %722 = vperm.xlu0 %721, %v720
    %v723 = vpop.permute.xlu0 %722
    %vm724 = vcmp.eq.s32.totalorder %v723, 1
    %v725 = vsel %vm724, %v718, %v659
    %726 = vset.pattern.permute.xlu0 0
    %727 = vperm.xlu0 %726, %v37
    %v728 = vpop.permute.xlu0 %727
    %vm729 = vcmp.eq.s32.totalorder %v39, %v728
    %v730 = vsel %vm729, 1.0, 0.0
    %732 = vrot.lane.b32.xlu0 %v725, 32
    %v733 = vpop.permute.xlu0 %732
    %vm735 = vcmask 64512
    %v737 = vsel %vm735, %v730, 0
    %739 = vmatpush.msra.mxu0 0.0
    %740 = vmatpush.msra.mxu0 0.0
    %741 = vmatpush.msra.mxu0 0.0
    %742 = vmatpush.msra.mxu0 0.0
    %743 = vmatpush.msra.mxu0 0.0
    %744 = vmatpush.msra.mxu0 0.0
    %745 = vmatpush.msra.mxu0 0.0
    %746 = vmatpush.msra.mxu0 0.0
    %747 = vmatpush.msra.mxu0 0.0
    %748 = vmatpush.msra.mxu0 0.0
    %749 = vmatpush.msra.mxu0 0.0
    %750 = vmatpush.msra.mxu0 0.0
    %751 = vmatpush.msra.mxu0 0.0
    %752 = vmatpush.msra.mxu0 0.0
    %753 = vmatpush.msra.mxu0 0.0
    %754 = vmatpush.msra.mxu0 %v733
    %755 = vmatmul.f32.gmra.mxu0 %v737
    %v756 = vpop.f32.mrf.mxu0
    %v757 = vadd.f32 0.0, %v756
    %758 = vdwg.mxu0
    %v760 = vrot.slane %v757, 1
    %v762 = vmul.f32 %v757, %v760
    %vm763 = vcmask 260096
    %v764 = vsel %vm763, %v762, 0.0
    %765 = vadd.xlane.f32.xlu0 %v764
    %v766 = vpop.xlane.xlu0 %765
    %v767 = vmul.f32 %v757, %v757
    %v768 = vsel %vm763, %v767, 0.0
    %769 = vadd.xlane.f32.xlu0 %v768
    %v770 = vpop.xlane.xlu0 %769
    %v771 = vrsqrt.pop %v770
    %v772 = vmul.f32 %v771, %v770
    %v773 = vmul.f32 %v772, %v771
    %v774 = vmul.f32 0.5, %v773
    %v775 = vsub.f32 1.5, %v774
    %v776 = vmul.f32 %v771, %v775
    %v777 = vmul.f32 %v770, %v776
    %vm778 = vcmp.eq.f32.partialorder %v770, inf
    %v779 = vsel %vm778, %v770, %v777
    %vm780 = vcmp.eq.f32.partialorder %v770, 0.0
    %v781 = vand.u32 %v770, 2147483648
    %v782 = vsel %vm780, %v781, %v779
    %vm783 = vcmask 261121
    %v784 = vsel %vm783, %v767, 0.0
    %785 = vadd.xlane.f32.xlu0 %v784
    %v786 = vpop.xlane.xlu0 %785
    %v787 = vrsqrt.pop %v786
    %v788 = vmul.f32 %v787, %v786
    %v789 = vmul.f32 %v788, %v787
    %v790 = vmul.f32 0.5, %v789
    %v791 = vsub.f32 1.5, %v790
    %v792 = vmul.f32 %v787, %v791
    %v793 = vmul.f32 %v786, %v792
    %vm794 = vcmp.eq.f32.partialorder %v786, inf
    %v795 = vsel %vm794, %v786, %v793
    %vm796 = vcmp.eq.f32.partialorder %v786, 0.0
    %v797 = vand.u32 %v786, 2147483648
    %v798 = vsel %vm796, %v797, %v795
    %v800 = vrot.slane %v798, 1
    %v802 = vmul.f32 %v782, %v800
    %v803 = vmax.f32 %v802, 1e-08
    %v804 = vrcp.pop %v803
    %v805 = vmul.f32 %v803, %v804
    %v806 = vsub.f32 1.0, %v805
    %v807 = vmul.f32 %v804, %v806
    %v808 = vadd.f32 %v804, %v807
    %vm809 = vweird.f32 %v803
    %vm810 = vweird.f32 %v804
    %vm811 = vmor %vm809, %vm810
    %v812 = vsel %vm811, %v804, %v808
    %v813 = vand.u32 2147483647, %v803
    %vm814 = vcmp.eq.f32.partialorder %v813, 8.507059e+37
    %v815 = vand.u32 %v803, 2147483648
    %v816 = vor.u32 1.1754944e-38, %v815
    %v817 = vsel %vm814, %v816, %v812
    %v818 = vmul.f32 %v766, %v817
    %v819 = vld [vmem:[#allocation2 + $0xb8] sm:$0x3]
    %v820 = vld [vmem:[#allocation2 + $0xc0] sm:$0x7f]
    %v821 = vld [vmem:[#allocation2 + $0xc8] sm:$0x1]
    %v822 = vld [vmem:[#allocation2 + $0xd0] sm:$0xff]
    %v823 = vld [vmem:[#allocation2 + $0xd8] sm:$0xff]
    %v824 = vld [vmem:[#allocation2 + $0xe0] sm:$0xff]
    %v825 = vld [vmem:[#allocation2 + $0xe8] sm:$0xff]
    %v826 = vld [vmem:[#allocation2 + $0xf0] sm:$0x1]
    %vm827 = vcmask 56320
    %v829 = vsel %vm827, %v819, 0
    %vm831 = vcmask 1046528
    %v833 = vsel %vm831, %v818, 0
    %835 = vmatpush.msra.mxu0 0.0
    %836 = vmatpush.msra.mxu0 0.0
    %837 = vmatpush.msra.mxu0 0.0
    %838 = vmatpush.msra.mxu0 0.0
    %839 = vmatpush.msra.mxu0 0.0
    %840 = vmatpush.msra.mxu0 0.0
    %841 = vmatpush.msra.mxu0 0.0
    %842 = vmatpush.msra.mxu0 0.0
    %843 = vmatpush.msra.mxu0 0.0
    %844 = vmatpush.msra.mxu0 0.0
    %845 = vmatpush.msra.mxu0 0.0
    %846 = vmatpush.msra.mxu0 0.0
    %847 = vmatpush.msra.mxu0 0.0
    %848 = vmatpush.msra.mxu0 0.0
    %849 = vmatpush.msra.mxu0 0.0
    %850 = vmatpush.msra.mxu0 %v833
    %851 = vmatmul.f32.gmra.mxu0 %v829
    %v852 = vpop.f32.mrf.mxu0
    %v853 = vadd.f32 0.0, %v852
    %854 = vdwg.mxu0
    %v855 = vmul.f32 %v853, 0.33333334
    %856 = vset.pattern.permute.xlu0 0
    %857 = vperm.xlu0 %856, %v818
    %v858 = vpop.permute.xlu0 %857
    %v860 = vmul.f32 %v858, %v820
    %v861 = vperm.slane %v821, 0
    %v863 = vsel %vm831, %v860, 0
    %865 = vmatpush.msra.mxu0 0.0
    %866 = vmatpush.msra.mxu0 0.0
    %867 = vmatpush.msra.mxu0 0.0
    %868 = vmatpush.msra.mxu0 0.0
    %869 = vmatpush.msra.mxu0 0.0
    %870 = vmatpush.msra.mxu0 0.0
    %871 = vmatpush.msra.mxu0 0.0
    %872 = vmatpush.msra.mxu0 0.0
    %873 = vmatpush.msra.mxu0 0.0
    %874 = vmatpush.msra.mxu0 0.0
    %875 = vmatpush.msra.mxu0 0.0
    %876 = vmatpush.msra.mxu0 0.0
    %877 = vmatpush.msra.mxu0 0.0
    %878 = vmatpush.msra.mxu0 0.0
    %879 = vmatpush.msra.mxu0 0.0
    %880 = vmatpush.msra.mxu0 %v863
    %881 = vmatmul.f32.gmra.mxu0 %v829
    %v882 = vpop.f32.mrf.mxu0
    %v883 = vadd.f32 %v861, %v882
    %884 = vdwg.mxu0
    %v885 = vmax.f32 %v883, 0.0
    %v886 = vperm.slane %v826, 0
    %v888 = vsel %vm194, %v885, 0
    %890 = vmatpush.msra.mxu0 0.0
    %891 = vmatpush.msra.mxu0 0.0
    %892 = vmatpush.msra.mxu0 0.0
    %893 = vmatpush.msra.mxu0 0.0
    %894 = vmatpush.msra.mxu0 0.0
    %895 = vmatpush.msra.mxu0 0.0
    %896 = vmatpush.msra.mxu0 0.0
    %897 = vmatpush.msra.mxu0 0.0
    %898 = vmatpush.msra.mxu0 0.0
    %899 = vmatpush.msra.mxu0 0.0
    %900 = vmatpush.msra.mxu0 0.0
    %901 = vmatpush.msra.mxu0 0.0
    %902 = vmatpush.msra.mxu0 %v825
    %903 = vmatpush.msra.mxu0 %v824
    %904 = vmatpush.msra.mxu0 %v823
    %905 = vmatpush.msra.mxu0 %v822
    %906 = vmatmul.f32.gmra.mxu0 %v888
    %v907 = vpop.f32.mrf.mxu0
    %v908 = vadd.f32 %v886, %v907
    %909 = vdwg.mxu0
    %vm910 = vcmask 17408
    %v911 = vsel %vm910, %v908, -inf
    %v912 = vrot.slane %v911, 4
    %v913 = vmax.f32 %v911, %v912
    %v914 = vrot.slane %v913, 2
    %v915 = vmax.f32 %v913, %v914
    %v916 = vrot.slane %v915, 1
    %v917 = vmax.f32 %v915, %v916
    %v918 = vsub.f32 %v908, %v917
    %v919 = vmul.f32 %v918, 1.442695
    %v920 = vpow.pop %v919
    %v921 = vsel %vm910, %v920, 0.0
    %v922 = vrot.slane %v921, 4
    %v923 = vadd.f32 %v921, %v922
    %v924 = vrot.slane %v923, 2
    %v925 = vadd.f32 %v923, %v924
    %v926 = vrot.slane %v925, 1
    %v927 = vadd.f32 %v925, %v926
    %v928 = vrcp.pop %v927
    %v929 = vmul.f32 %v927, %v928
    %v930 = vsub.f32 1.0, %v929
    %v931 = vmul.f32 %v928, %v930
    %v932 = vadd.f32 %v928, %v931
    %vm933 = vweird.f32 %v927
    %vm934 = vweird.f32 %v928
    %vm935 = vmor %vm933, %vm934
    %v936 = vsel %vm935, %v928, %v932
    %v937 = vand.u32 2147483647, %v927
    %vm938 = vcmp.eq.f32.partialorder %v937, 8.507059e+37
    %v939 = vand.u32 %v927, 2147483648
    %v940 = vor.u32 1.1754944e-38, %v939
    %v941 = vsel %vm938, %v940, %v936
    %v942 = vmul.f32 %v920, %v941
    %943 = vst [vmem:[%s2] sm:$0xff] 0.0
    %944 = vst.msk [vmem:[%s2] sm:$0x3] %vm910, %v942
    %946 = vrot.lane.b32.xlu0 %v855, 3
    %v947 = vpop.permute.xlu0 %946
    %vm949 = vcmask 25624
    %950 = vst.msk [vmem:[%s2] sm:$0x3] %vm949, %v947
    // Predicated region
    $region14: #{forward.1} parent=1 // pred_check
      _
    $region15: #{forward.1} parent=1 // pred_check_branch
      %952 = sbr.rel (0) target = $region17
    $region16: #{forward.1} parent=1 // pred_region
      _
    $region17: #{forward.1} parent=1 // pred_fallthru
      _
    // Predicated region
    $region18: #{forward.1} parent=1 // pred_check
      _
    $region19: #{forward.1} parent=1 // pred_check_branch
      %954 = sbr.rel (0) target = $region21
    $region20: #{forward.1} parent=1 // pred_region
      _
    $region21: #{forward.1} parent=1 // pred_fallthru
      _
    %955 = vsyncpa [#allocation3], 1

</llo_original>
